<compile_context>
chip_gen: v5e
topology: v5e:2x2
jax: 0.10.0
libtpu: 0.0.40
codegen_flags: <defaults>
</compile_context>

<pallas_src>
import functools

import jax
import jax.numpy as jnp
from jax.experimental import pallas as pl
from jax.experimental.pallas import tpu as pltpu


# ----------------------------------------------------------------------------
# Fused kernel: in-VMEM im2col -> conv3x3(+bias,ReLU) -> flatten -> linear(+b)
# One grid step == Nb batch elements.
#   x_ref  : (1, Nb, Cin_pad, P)   flat zero-padded images (row stride = W+2)
#   wc_ref : (Cout, 9*Cin_pad)     conv weight, column = (kh*3+kw)*Cin_pad + ci
#   bc_ref : (Cout, 1)             conv bias
#   wf_ref : (Cout*P, 128)         head weight re-indexed to padded flat
#                                  positions (zero rows at invalid positions),
#                                  lane-padded output dim 10 -> 128
#   bf_ref : (1, 128)              head bias (lane-padded)
#   o_ref  : (1, Nb, 128)          lane-dense padded logits block
# ----------------------------------------------------------------------------
def _make_kernel(kh_taps: int, kw_taps: int, wpad: int):
    def fused_backbone_kernel(x_ref, wc_ref, bc_ref, wf_ref, bf_ref, o_ref):
        nb = x_ref.shape[1]
        p = x_ref.shape[3]
        cout, k = wc_ref.shape

        xx = x_ref[0]                                       # (Nb, Cin_pad, P)

        # ---- in-kernel im2col: 9 lane-rolls of the flat padded image -------
        # Output pixel (h, w) lives at flat position h*(W+2)+w; tap (kh, kw)
        # is a constant flat shift d = kh*(W+2)+kw (XLU lane rotation, cheap).
        taps = []
        for kh in range(kh_taps):
            for kw in range(kw_taps):
                d = kh * wpad + kw
                taps.append(xx if d == 0 else pltpu.roll(xx, shift=p - d, axis=2))
        # Each tap is an aligned 8-sublane group -> cheap sublane concat.
        patches = jnp.concatenate(taps, axis=1)             # (Nb, 9*Cin_pad, P)

        # ---- conv as one batched K=72 MXU matmul + bias + ReLU -------------
        wc_b = jnp.broadcast_to(wc_ref[...][None, :, :], (nb, cout, k))
        r = jnp.einsum("nok,nkp->nop", wc_b, patches,
                       preferred_element_type=jnp.float32)  # (Nb, Cout, P)
        r = jnp.maximum(r + bc_ref[...][None, :, :], 0.0)

        # ---- flatten: single aligned sublane->lane relayout, then head -----
        feat = r.reshape(nb, cout * p)                       # (Nb, Cout*P)
        y = jnp.dot(feat, wf_ref[...],
                    preferred_element_type=jnp.float32) + bf_ref[...]
        o_ref[0] = y.astype(o_ref.dtype)                     # (Nb, 128) vst

    return fused_backbone_kernel


# ----------------------------------------------------------------------------
# One-time weight re-layouts (hoisted out of the per-call forward path).
# ----------------------------------------------------------------------------
def prepare_params(conv_w, conv_b, fc_w, fc_b, H, W, lane_out=128):
    Cout, Cin, KH, KW = conv_w.shape
    O = fc_w.shape[0]
    cin_pad = -(-Cin // 8) * 8                    # pad channels to sublane tile
    Hp, Wp = H + KH - 1, W + KW - 1               # "same"-padded image dims
    P = -(-(Hp * Wp) // 128) * 128                # lane-aligned flat strip len

    # conv weight -> (Cout, KH*KW*cin_pad), column = (kh*KW+kw)*cin_pad + ci
    wc_t = jnp.asarray(conv_w).transpose(0, 2, 3, 1)             # (Cout,KH,KW,Cin)
    wc_t = jnp.pad(wc_t, ((0, 0), (0, 0), (0, 0), (0, cin_pad - Cin)))
    wc2 = wc_t.reshape(Cout, KH * KW * cin_pad)

    bc2 = jnp.asarray(conv_b).reshape(Cout, 1)

    # head weight re-indexed to padded flat positions:
    #   row c*P + h*Wp + w  <-  fc_w[:, c*H*W + h*W + w]; all other rows zero,
    # so garbage conv values at padding columns contribute exactly 0.
    wf_t = jnp.asarray(fc_w).T.reshape(Cout, H, W, O)
    wf_t = jnp.pad(wf_t, ((0, 0), (0, Hp - H), (0, Wp - W), (0, lane_out - O)))
    wf_t = wf_t.reshape(Cout, Hp * Wp, lane_out)
    wf2 = jnp.pad(wf_t, ((0, 0), (0, P - Hp * Wp), (0, 0))).reshape(Cout * P,
                                                                    lane_out)

    bf2 = jnp.pad(jnp.asarray(fc_b), (0, lane_out - O)).reshape(1, lane_out)
    return wc2, bc2, wf2, bf2


# ----------------------------------------------------------------------------
# Forward wrapper.
# ----------------------------------------------------------------------------
@functools.partial(jax.jit, static_argnames=("num_out",))
def backbone_forward(x_nchw, wc2, bc2, wf2, bf2, *, num_out):
    """BackBone.forward: head(base_model(x)). Returns (N, num_out) f32."""
    N, Cin, H, W = x_nchw.shape
    Cout = wc2.shape[0]
    OP = wf2.shape[1]
    P = wf2.shape[0] // Cout
    cin_pad = -(-Cin // 8) * 8
    Hp, Wp = H + 2, W + 2

    # Batch blocking: big blocks amortize per-step overhead; keep >=2 steps
    # when N > 1 so v7x's two TensorCores both get work. Nb=128 stays well
    # under the default 32 MiB scoped VMEM (bump vmem_limit_bytes for larger).
    NB_TARGET = 128
    nb = NB_TARGET if N >= 2 * NB_TARGET else max(1, (N + 1) // 2)
    G = -(-N // nb)
    Npad = G * nb

    # Flat zero-padded images: contiguous pad + reshape (no 9x im2col blowup).
    x_pad = jnp.pad(x_nchw, ((0, Npad - N), (0, cin_pad - Cin), (1, 1), (1, 1)))
    x_flat = x_pad.reshape(Npad, cin_pad, Hp * Wp)
    x_flat = jnp.pad(x_flat, ((0, 0), (0, 0), (0, P - Hp * Wp)))
    xg = x_flat.reshape(G, nb, cin_pad, P)

    kernel = _make_kernel(3, 3, Wp)

    flops = 2 * Npad * (Cout * (9 * cin_pad) * P + (Cout * P) * OP)
    bytes_accessed = 4 * (xg.size + wc2.size + bc2.size + wf2.size + bf2.size
                          + Npad * OP)

    out = pl.pallas_call(
        kernel,
        grid=(G,),
        in_specs=[
            pl.BlockSpec((1, nb, cin_pad, P), lambda i: (i, 0, 0, 0)),
            pl.BlockSpec((Cout, 9 * cin_pad), lambda i: (0, 0)),   # resident
            pl.BlockSpec((Cout, 1), lambda i: (0, 0)),
            pl.BlockSpec((Cout * P, OP), lambda i: (0, 0)),        # resident
            pl.BlockSpec((1, OP), lambda i: (0, 0)),
        ],
        out_specs=pl.BlockSpec((1, nb, OP), lambda i: (i, 0, 0)),
        out_shape=jax.ShapeDtypeStruct((G, nb, OP), jnp.float32),
        compiler_params=pltpu.CompilerParams(
            dimension_semantics=("parallel",)),
        cost_estimate=pl.CostEstimate(
            flops=flops, transcendentals=0, bytes_accessed=bytes_accessed),
    )(xg, wc2, bc2, wf2, bf2)

    return out.reshape(Npad, OP)[:N, :num_out]


def init_params():
    """Deterministic synthetic parameters in PyTorch-native layouts."""
    Cin, Cout, H, W, O = 4, 8, 16, 16, 10
    k1, k2, k3, k4 = jax.random.split(jax.random.PRNGKey(42), 4)
    conv_w = 0.1 * jax.random.normal(k1, (Cout, Cin, 3, 3), jnp.float32)
    conv_b = 0.1 * jax.random.normal(k2, (Cout,), jnp.float32)
    fc_w = 0.05 * jax.random.normal(k3, (O, Cout * H * W), jnp.float32)
    fc_b = 0.05 * jax.random.normal(k4, (O,), jnp.float32)
    return conv_w, conv_b, fc_w, fc_b


def reference_forward(x, conv_w, conv_b, fc_w, fc_b):
    """Pure-JAX (XLA) reference matching the PyTorch module semantics."""
    conv = jax.lax.conv_general_dilated(
        x, conv_w, window_strides=(1, 1), padding=((1, 1), (1, 1)),
        dimension_numbers=("NCHW", "OIHW", "NCHW"),
        precision=jax.lax.Precision.HIGHEST)
    conv = jnp.maximum(conv + conv_b[None, :, None, None], 0.0)
    feat = conv.reshape(conv.shape[0], -1)                 # NCHW flatten
    return jnp.matmul(feat, fc_w.T,
                      precision=jax.lax.Precision.HIGHEST) + fc_b


if __name__ == "__main__":
    # Small deterministic input consistent with the conv base_model: (N,C,H,W).
    x = jax.random.normal(jax.random.PRNGKey(0), (2, 4, 16, 16), jnp.float32)
    conv_w, conv_b, fc_w, fc_b = init_params()

    # Weight re-layouts done once (not per forward call).
    wc2, bc2, wf2, bf2 = prepare_params(conv_w, conv_b, fc_w, fc_b, H=16, W=16)

    y = backbone_forward(x, wc2, bc2, wf2, bf2, num_out=10)
    jax.block_until_ready(y)
    assert y.shape == (2, 10) and y.dtype == jnp.float32

    y_ref = reference_forward(x, conv_w, conv_b, fc_w, fc_b)
    assert bool(jnp.allclose(y, y_ref, rtol=2e-2, atol=2e-2)), "mismatch vs reference"

    print("KERNEL_OK")
</pallas_src>

<mosaic_0001>
module attributes {stable_mosaic.version = 11 : i64} {
  func.func @fused_backbone_kernel(%arg0: i32, %arg1: memref<1x1x8x384xf32, #tpu.memory_space<vmem>>, %arg2: memref<8x72xf32, #tpu.memory_space<vmem>>, %arg3: memref<8x1xf32, #tpu.memory_space<vmem>>, %arg4: memref<3072x128xf32, #tpu.memory_space<vmem>>, %arg5: memref<1x128xf32, #tpu.memory_space<vmem>>, %arg6: memref<1x1x128xf32, #tpu.memory_space<vmem>>) attributes {dimension_semantics = [#tpu.dimension_semantics<parallel>], iteration_bounds = array<i64: 2>, scalar_prefetch = 0 : i64, scratch_operands = 0 : i64, tpu.core_type = #tpu.core_type<tc>, window_params = [{transform_indices = @transform_0, window_bounds = array<i64: 1, 1, 8, 384>}, {pipeline_mode = #tpu.pipeline_mode<synchronous>, transform_indices = @transform_1, window_bounds = array<i64: 8, 72>}, {pipeline_mode = #tpu.pipeline_mode<synchronous>, transform_indices = @transform_2, window_bounds = array<i64: 8, 1>}, {pipeline_mode = #tpu.pipeline_mode<synchronous>, transform_indices = @transform_3, window_bounds = array<i64: 3072, 128>}, {pipeline_mode = #tpu.pipeline_mode<synchronous>, transform_indices = @transform_4, window_bounds = array<i64: 1, 128>}, {transform_indices = @transform_5, window_bounds = array<i64: 1, 1, 128>}]} {
    %c0 = arith.constant 0 : index
    %c0_0 = arith.constant 0 : index
    %c0_1 = arith.constant 0 : index
    %c0_2 = arith.constant 0 : index
    %0 = vector.load %arg1[%c0, %c0_0, %c0_1, %c0_2] : memref<1x1x8x384xf32, #tpu.memory_space<vmem>>, vector<1x1x8x384xf32>
    %1 = vector.shape_cast %0 : vector<1x1x8x384xf32> to vector<1x8x384xf32>
    %c383_i32 = arith.constant 383 : i32
    %2 = tpu.dynamic_rotate %1 by %c383_i32 dim 2 : vector<1x8x384xf32>, i32 -> vector<1x8x384xf32>
    %c382_i32 = arith.constant 382 : i32
    %3 = tpu.dynamic_rotate %1 by %c382_i32 dim 2 : vector<1x8x384xf32>, i32 -> vector<1x8x384xf32>
    %c366_i32 = arith.constant 366 : i32
    %4 = tpu.dynamic_rotate %1 by %c366_i32 dim 2 : vector<1x8x384xf32>, i32 -> vector<1x8x384xf32>
    %c365_i32 = arith.constant 365 : i32
    %5 = tpu.dynamic_rotate %1 by %c365_i32 dim 2 : vector<1x8x384xf32>, i32 -> vector<1x8x384xf32>
    %c364_i32 = arith.constant 364 : i32
    %6 = tpu.dynamic_rotate %1 by %c364_i32 dim 2 : vector<1x8x384xf32>, i32 -> vector<1x8x384xf32>
    %c348_i32 = arith.constant 348 : i32
    %7 = tpu.dynamic_rotate %1 by %c348_i32 dim 2 : vector<1x8x384xf32>, i32 -> vector<1x8x384xf32>
    %c347_i32 = arith.constant 347 : i32
    %8 = tpu.dynamic_rotate %1 by %c347_i32 dim 2 : vector<1x8x384xf32>, i32 -> vector<1x8x384xf32>
    %c346_i32 = arith.constant 346 : i32
    %9 = tpu.dynamic_rotate %1 by %c346_i32 dim 2 : vector<1x8x384xf32>, i32 -> vector<1x8x384xf32>
    %10 = tpu.concatenate %1, %2, %3, %4, %5, %6, %7, %8, %9 in 1 : vector<1x8x384xf32>, vector<1x8x384xf32>, vector<1x8x384xf32>, vector<1x8x384xf32>, vector<1x8x384xf32>, vector<1x8x384xf32>, vector<1x8x384xf32>, vector<1x8x384xf32>, vector<1x8x384xf32> -> vector<1x72x384xf32>
    %c0_3 = arith.constant 0 : index
    %c0_4 = arith.constant 0 : index
    %11 = vector.load %arg2[%c0_3, %c0_4] : memref<8x72xf32, #tpu.memory_space<vmem>>, vector<8x72xf32>
    %12 = vector.shape_cast %11 : vector<8x72xf32> to vector<1x8x72xf32>
    "tpu.trace_start"() <{level = 10 : i32, message = "nok,nkp->nop"}> : () -> ()
    %cst = arith.constant dense<0.000000e+00> : vector<1x8x384xf32>
    %13 = tpu.matmul %12, %10, %cst {dimension_numbers = #tpu.dot_dimension_numbers<[2], [1], [1], [2], [0, 0, 0, 1, 1, 2], [0], [0]>} : vector<1x8x72xf32>, vector<1x72x384xf32>, vector<1x8x384xf32> -> vector<1x8x384xf32>
    "tpu.trace_stop"() : () -> ()
    %c0_5 = arith.constant 0 : index
    %c0_6 = arith.constant 0 : index
    %14 = vector.load %arg3[%c0_5, %c0_6] : memref<8x1xf32, #tpu.memory_space<vmem>>, vector<8x1xf32>
    %15 = vector.shape_cast %14 : vector<8x1xf32> to vector<1x8x1xf32>
    %16 = vector.broadcast %15 : vector<1x8x1xf32> to vector<1x8x384xf32>
    %17 = arith.addf %13, %16 : vector<1x8x384xf32>
    %cst_7 = arith.constant 0.000000e+00 : f32
    %18 = vector.broadcast %cst_7 : f32 to vector<1x8x384xf32>
    %19 = arith.maximumf %17, %18 : vector<1x8x384xf32>
    %20 = vector.shape_cast %19 : vector<1x8x384xf32> to vector<1x3072xf32>
    %c0_8 = arith.constant 0 : index
    %c0_9 = arith.constant 0 : index
    %21 = vector.load %arg4[%c0_8, %c0_9] : memref<3072x128xf32, #tpu.memory_space<vmem>>, vector<3072x128xf32>
    %cst_10 = arith.constant dense<0.000000e+00> : vector<1x128xf32>
    %22 = tpu.matmul %20, %21, %cst_10 {dimension_numbers = #tpu.dot_dimension_numbers<[1], [0], [0], [1], [0, 0, 1, 1], [], []>} : vector<1x3072xf32>, vector<3072x128xf32>, vector<1x128xf32> -> vector<1x128xf32>
    %c0_11 = arith.constant 0 : index
    %c0_12 = arith.constant 0 : index
    %23 = vector.load %arg5[%c0_11, %c0_12] : memref<1x128xf32, #tpu.memory_space<vmem>>, vector<1x128xf32>
    %24 = arith.addf %22, %23 : vector<1x128xf32>
    %c0_13 = arith.constant 0 : index
    %c0_14 = arith.constant 0 : index
    %c0_15 = arith.constant 0 : index
    %25 = vector.load %arg6[%c0_13, %c0_14, %c0_15] : memref<1x1x128xf32, #tpu.memory_space<vmem>>, vector<1x1x128xf32>
    %26 = vector.shape_cast %25 : vector<1x1x128xf32> to vector<1x128xf32>
    %27 = vector.shape_cast %24 : vector<1x128xf32> to vector<1x1x128xf32>
    tpu.vector_store %arg6[%c0_13, %c0_14, %c0_15], %27 {strides = array<i32>} : memref<1x1x128xf32, #tpu.memory_space<vmem>>, vector<1x1x128xf32>,
    return
  }
  func.func @transform_0(%arg0: i32) -> (i32, i32, i32, i32) {
    %c0_i32 = arith.constant 0 : i32
    %c0_i32_0 = arith.constant 0 : i32
    %c0_i32_1 = arith.constant 0 : i32
    %c0_i32_2 = arith.constant 0 : i32
    return %arg0, %c0_i32, %c0_i32_0, %c0_i32_1 : i32, i32, i32, i32
  }
  func.func @transform_1(%arg0: i32) -> (i32, i32) {
    %c0_i32 = arith.constant 0 : i32
    %c0_i32_0 = arith.constant 0 : i32
    %c0_i32_1 = arith.constant 0 : i32
    return %c0_i32, %c0_i32_0 : i32, i32
  }
  func.func @transform_2(%arg0: i32) -> (i32, i32) {
    %c0_i32 = arith.constant 0 : i32
    %c0_i32_0 = arith.constant 0 : i32
    %c0_i32_1 = arith.constant 0 : i32
    return %c0_i32, %c0_i32_0 : i32, i32
  }
  func.func @transform_3(%arg0: i32) -> (i32, i32) {
    %c0_i32 = arith.constant 0 : i32
    %c0_i32_0 = arith.constant 0 : i32
    %c0_i32_1 = arith.constant 0 : i32
    return %c0_i32, %c0_i32_0 : i32, i32
  }
  func.func @transform_4(%arg0: i32) -> (i32, i32) {
    %c0_i32 = arith.constant 0 : i32
    %c0_i32_0 = arith.constant 0 : i32
    %c0_i32_1 = arith.constant 0 : i32
    return %c0_i32, %c0_i32_0 : i32, i32
  }
  func.func @transform_5(%arg0: i32) -> (i32, i32, i32) {
    %c0_i32 = arith.constant 0 : i32
    %c0_i32_0 = arith.constant 0 : i32
    %c0_i32_1 = arith.constant 0 : i32
    return %arg0, %c0_i32, %c0_i32_0 : i32, i32, i32
  }
}

</mosaic_0001>

<llo_original>
// kernel: backbone_forward.1
$region0: #{backbone_forward.1}
  #allocation0 [shape = 'u32[]', space=smem, size = 0x4, offset = 0x4, fixed_abs, tag = 'smem constant byte address 0x4 - core index']
  #allocation1 [shape = 'u32[72,128]{1,0:T(1,128)}', space=vmem, size = 0x9000, scoped, tag = 'internal scratch']
  %s0 = inlined_call_operand.vmem [shape: f32[2,1,8,384], index: 0, kind: input, shape index: {}]
  %s1 = inlined_call_operand.hbm [shape: f32[8,72], index: 1, kind: input, shape index: {}]
  %s2 = inlined_call_operand.vmem [shape: f32[8,1], index: 2, kind: input, shape index: {}]
  %s3 = inlined_call_operand.hbm [shape: f32[3072,128], index: 3, kind: input, shape index: {}]
  %s4 = inlined_call_operand.hbm [shape: f32[1,128], index: 4, kind: input, shape index: {}]
  %s5 = inlined_call_operand.hbm [shape: f32[2,1,128], index: 5, kind: output, shape index: {}]
  %s6 = sld [smem:[#allocation0]]
  $region65: #{backbone_forward.1} parent=0
    _
  %s8 = ssub.s32 1, %s6
  %s9 = scalar_select 0, %s8, %s6
  $region1: #{backbone_forward.1} parent=0
    #allocation2 [shape = 'u8[4096]{0}', space=vmem, size = 0x1000, scoped, tag = 'input window, operand 1, single buffered']
    #allocation3 [shape = 's32[2]{0}', space=sflag, size = 0x8, scoped, tag = 'scoped memory for backbone_forward.1']
    #allocation4 [shape = 's32[2]{0}', space=sflag, size = 0x8, scoped, tag = 'scoped memory for backbone_forward.1']
    #allocation5 [shape = 'u8[1572864]{0}', space=vmem, size = 0x180000, scoped, tag = 'input window, operand 3, single buffered']
    #allocation6 [shape = 's32[1]{0}', space=sflag, size = 0x4, scoped, tag = 'scoped memory for backbone_forward.1']
    #allocation7 [shape = 'u8[512]{0}', space=vmem, size = 0x400, scoped, tag = 'input window, operand 4, single buffered']
    #allocation8 [shape = 'u8[1024]{0}', space=vmem, size = 0x400, scoped, tag = 'output window, operand 0']
    %10 = vsyncpa [#allocation3], 0
    %11 = vsyncpa [#allocation6], 0
    %12 = vsyncpa [#allocation4], 0
    %s13 = scalar_lea.sflag [#allocation4], 1
    %14 = vsyncpa %s13, 0
    loop: start=0, step=1, limit=4
    $region2: #{backbone_forward.1} parent=1 // loop_pre_header
      _
    $region3: #{backbone_forward.1} parent=1 // loop_header
      %s16 = sphi 0, %s20
      %p17 = scmp.ge.s32.totalorder %s16, 4
      %s26 = sphi 0, %s28
      %s29 = sphi 0, %s26
      %s30 = sphi 0, %s29
      %s46 = sphi 0, %s30
      %s50 = sphi 0, %s50
      %s52 = sphi 0, %s50
      %s53 = sphi 0, %s52
      %s67 = sphi 0, %s53
      %s71 = sphi 0, %s71
      %s73 = sphi 0, %s71
      %s74 = sphi 0, %s73
      %s88 = sphi 0, %s74
      %s92 = sphi 0, %s92
      %s94 = sphi 0, %s92
      %s95 = sphi 0, %s94
      %s109 = sphi 0, %s95
      %s113 = sphi 0, %s113
      %s115 = sphi 0, %s113
      %s116 = sphi 0, %s115
      %s130 = sphi 0, %s116
      %s136 = sphi 0, %s138
      %s139 = sphi 0, %s136
      %s140 = sphi 0, %s139
      %s156 = sphi 0, %s140
    $region4: #{backbone_forward.1} parent=1 // loop_header_branch
      %19 = sbr.rel (%p17) target = $region8
    $region5: #{backbone_forward.1} parent=1 // loop_body
      %s21 = ssub.s32 %s16, 1
      %s22 = ssub.s32 %s16, 2
      %s23 = sadd.s32 %s16, 1
      %s24 = ssub.s32 %s16, %s23
      %p25 = scmp.eq.s32.totalorder %s24, 0
      %s27 = sadd.s32 %s26, 1
      %s28 = scalar_select %p25, %s26, %s27
      %p31 = pneg %p25
      %p32 = scmp.eq.s32.totalorder %s16, 1
      %p33 = por %p31, %p32
      %p34 = scmp.ne.s32.totalorder %s26, %s29
      %p35 = scmp.eq.s32.totalorder %s16, 0
      %p36 = por %p34, %p35
      %p37 = scmp.ne.s32.totalorder %s26, %s29
      %p38 = scmp.eq.s32.totalorder %s21, 1
      %p39 = por %p37, %p38
      %p40 = scmp.ne.s32.totalorder %s29, %s30
      %p41 = scmp.eq.s32.totalorder %s21, 0
      %p42 = por %p40, %p41
      %p43 = scmp.ne.s32.totalorder %s29, %s30
      %p44 = scmp.eq.s32.totalorder %s22, 1
      %p45 = por %p43, %p44
      %p47 = scmp.ne.s32.totalorder %s30, %s46
      %p48 = scmp.eq.s32.totalorder %s22, 0
      %p49 = por %p47, %p48
      %s51 = sadd.s32 %s50, 1
      %p54 = scmp.eq.s32.totalorder %s16, 1
      %p55 = scmp.ne.s32.totalorder %s50, %s52
      %p56 = scmp.eq.s32.totalorder %s16, 0
      %p57 = por %p55, %p56
      %p58 = scmp.ne.s32.totalorder %s50, %s52
      %p59 = scmp.eq.s32.totalorder %s21, 1
      %p60 = por %p58, %p59
      %p61 = scmp.ne.s32.totalorder %s52, %s53
      %p62 = scmp.eq.s32.totalorder %s21, 0
      %p63 = por %p61, %p62
      %p64 = scmp.ne.s32.totalorder %s52, %s53
      %p65 = scmp.eq.s32.totalorder %s22, 1
      %p66 = por %p64, %p65
      %p68 = scmp.ne.s32.totalorder %s53, %s67
      %p69 = scmp.eq.s32.totalorder %s22, 0
      %p70 = por %p68, %p69
      %s72 = sadd.s32 %s71, 1
      %p75 = scmp.eq.s32.totalorder %s16, 1
      %p76 = scmp.ne.s32.totalorder %s71, %s73
      %p77 = scmp.eq.s32.totalorder %s16, 0
      %p78 = por %p76, %p77
      %p79 = scmp.ne.s32.totalorder %s71, %s73
      %p80 = scmp.eq.s32.totalorder %s21, 1
      %p81 = por %p79, %p80
      %p82 = scmp.ne.s32.totalorder %s73, %s74
      %p83 = scmp.eq.s32.totalorder %s21, 0
      %p84 = por %p82, %p83
      %p85 = scmp.ne.s32.totalorder %s73, %s74
      %p86 = scmp.eq.s32.totalorder %s22, 1
      %p87 = por %p85, %p86
      %p89 = scmp.ne.s32.totalorder %s74, %s88
      %p90 = scmp.eq.s32.totalorder %s22, 0
      %p91 = por %p89, %p90
      %s93 = sadd.s32 %s92, 1
      %p96 = scmp.eq.s32.totalorder %s16, 1
      %p97 = scmp.ne.s32.totalorder %s92, %s94
      %p98 = scmp.eq.s32.totalorder %s16, 0
      %p99 = por %p97, %p98
      %p100 = scmp.ne.s32.totalorder %s92, %s94
      %p101 = scmp.eq.s32.totalorder %s21, 1
      %p102 = por %p100, %p101
      %p103 = scmp.ne.s32.totalorder %s94, %s95
      %p104 = scmp.eq.s32.totalorder %s21, 0
      %p105 = por %p103, %p104
      %p106 = scmp.ne.s32.totalorder %s94, %s95
      %p107 = scmp.eq.s32.totalorder %s22, 1
      %p108 = por %p106, %p107
      %p110 = scmp.ne.s32.totalorder %s95, %s109
      %p111 = scmp.eq.s32.totalorder %s22, 0
      %p112 = por %p110, %p111
      %s114 = sadd.s32 %s113, 1
      %p117 = scmp.eq.s32.totalorder %s16, 1
      %p118 = scmp.ne.s32.totalorder %s113, %s115
      %p119 = scmp.eq.s32.totalorder %s16, 0
      %p120 = por %p118, %p119
      %p121 = scmp.ne.s32.totalorder %s113, %s115
      %p122 = scmp.eq.s32.totalorder %s21, 1
      %p123 = por %p121, %p122
      %p124 = scmp.ne.s32.totalorder %s115, %s116
      %p125 = scmp.eq.s32.totalorder %s21, 0
      %p126 = por %p124, %p125
      %p127 = scmp.ne.s32.totalorder %s115, %s116
      %p128 = scmp.eq.s32.totalorder %s22, 1
      %p129 = por %p127, %p128
      %p131 = scmp.ne.s32.totalorder %s116, %s130
      %p132 = scmp.eq.s32.totalorder %s22, 0
      %p133 = por %p131, %p132
      %s134 = ssub.s32 %s16, %s23
      %p135 = scmp.eq.s32.totalorder %s134, 0
      %s137 = sadd.s32 %s136, 1
      %s138 = scalar_select %p135, %s136, %s137
      %p141 = pneg %p135
      %p142 = scmp.eq.s32.totalorder %s16, 1
      %p143 = por %p141, %p142
      %p144 = scmp.ne.s32.totalorder %s136, %s139
      %p145 = scmp.eq.s32.totalorder %s16, 0
      %p146 = por %p144, %p145
      %p147 = scmp.ne.s32.totalorder %s136, %s139
      %p148 = scmp.eq.s32.totalorder %s21, 1
      %p149 = por %p147, %p148
      %p150 = scmp.ne.s32.totalorder %s139, %s140
      %p151 = scmp.eq.s32.totalorder %s21, 0
      %p152 = por %p150, %p151
      %p153 = scmp.ne.s32.totalorder %s139, %s140
      %p154 = scmp.eq.s32.totalorder %s22, 1
      %p155 = por %p153, %p154
      %p157 = scmp.ne.s32.totalorder %s140, %s156
      %p158 = scmp.eq.s32.totalorder %s22, 0
      %p159 = por %p157, %p158
      %p160 = scmp.le.s32.totalorder 1, %s16
      %p161 = scmp.lt.s32.totalorder %s16, 3
      %p162 = pnand %p160, %p161
      %p163 = pneg %p162
      // Predicated region
      $region9: #{backbone_forward.1} parent=5 // pred_check
        _
      $region10: #{backbone_forward.1} parent=5 // pred_check_branch
        %165 = sbr.rel (%p162) target = $region12
      $region11: #{backbone_forward.1} parent=5 // pred_region
        %s166 = ssub.s32 %s16, 1
        // Predicated region
        $region13: #{backbone_forward.1} parent=11 // pred_check
          %p167 = pneg %p63
        $region14: #{backbone_forward.1} parent=11 // pred_check_branch
          %169 = sbr.rel (%p167) target = $region16
        $region15: #{backbone_forward.1} parent=11 // pred_region
          %171 = vsyncadd [#allocation3], 0
          %s173 = sshll.u32 %s1, 4
          %s174 = int_to_ptr.hbm [resolvable:$true] %s173
          %s175 = sshll.u32 [#allocation2], 4
          %s176 = int_to_ptr.vmem [resolvable:$true] %s175
          %178 = dma.hbm_to_vmem [thread:$0]  %s174, 128, %s176, [#allocation3]
        $region16: #{backbone_forward.1} parent=11 // pred_fallthru
          _
        // Predicated region
        $region17: #{backbone_forward.1} parent=11 // pred_check
          %p179 = pneg %p84
        $region18: #{backbone_forward.1} parent=11 // pred_check_branch
          %181 = sbr.rel (%p179) target = $region20
        $region19: #{backbone_forward.1} parent=11 // pred_region
          _
        $region20: #{backbone_forward.1} parent=11 // pred_fallthru
          _
        // Predicated region
        $region21: #{backbone_forward.1} parent=11 // pred_check
          %p182 = pneg %p105
        $region22: #{backbone_forward.1} parent=11 // pred_check_branch
          %184 = sbr.rel (%p182) target = $region24
        $region23: #{backbone_forward.1} parent=11 // pred_region
          %186 = vsyncadd [#allocation6], 0
          %s187 = sshll.u32 %s3, 4
          %s188 = int_to_ptr.hbm [resolvable:$true] %s187
          %s189 = sshll.u32 [#allocation5], 4
          %s190 = int_to_ptr.vmem [resolvable:$true] %s189
          %195 = dma.hbm_to_vmem [thread:$0]  %s188, 49152, %s190, [#allocation6], 128, 128, 8
        $region24: #{backbone_forward.1} parent=11 // pred_fallthru
          _
        // Predicated region
        $region25: #{backbone_forward.1} parent=11 // pred_check
          %p196 = pneg %p126
        $region26: #{backbone_forward.1} parent=11 // pred_check_branch
          %198 = sbr.rel (%p196) target = $region28
        $region27: #{backbone_forward.1} parent=11 // pred_region
          %200 = vsyncadd [#allocation6], 0
          %s202 = sshll.u32 %s4, 4
          %s203 = int_to_ptr.hbm [resolvable:$true] %s202
          %s204 = sshll.u32 [#allocation7], 4
          %s205 = int_to_ptr.vmem [resolvable:$true] %s204
          %207 = dma.hbm_to_vmem [thread:$0]  %s203, 16, %s205, [#allocation6]
        $region28: #{backbone_forward.1} parent=11 // pred_fallthru
          _
      $region12: #{backbone_forward.1} parent=5 // pred_fallthru
        _
      %p208 = scmp.lt.s32.totalorder %s16, 2
      // Predicated region
      $region29: #{backbone_forward.1} parent=5 // pred_check
        %p209 = pneg %p208
      $region30: #{backbone_forward.1} parent=5 // pred_check_branch
        %211 = sbr.rel (%p209) target = $region32
      $region31: #{backbone_forward.1} parent=5 // pred_region
        // Predicated region
        $region33: #{backbone_forward.1} parent=31 // pred_check
          %p212 = pneg %p36
        $region34: #{backbone_forward.1} parent=31 // pred_check_branch
          %214 = sbr.rel (%p212) target = $region36
        $region35: #{backbone_forward.1} parent=31 // pred_region
          %p215 = scmp.lt.s32.totalorder %s16, 1
          %s216 = scalar_select %p215, %s16, 1
          %s217 = smul.addr %s216, 3
          %s218 = smul.addr %s217, 8
          %s219 = scalar_lea.vmem %s0, %s218
        $region36: #{backbone_forward.1} parent=31 // pred_fallthru
          _
      $region32: #{backbone_forward.1} parent=5 // pred_fallthru
        _
      %p220 = scmp.le.s32.totalorder 1, %s16
      %p221 = scmp.lt.s32.totalorder %s16, 3
      %p222 = pnand %p220, %p221
      %p223 = pneg %p222
      // Predicated region
      $region37: #{backbone_forward.1} parent=5 // pred_check
        _
      $region38: #{backbone_forward.1} parent=5 // pred_check_branch
        %225 = sbr.rel (%p222) target = $region40
      $region39: #{backbone_forward.1} parent=5 // pred_region
        %s226 = ssub.s32 %s16, 1
        // Predicated region
        $region41: #{backbone_forward.1} parent=39 // pred_check
          %p227 = pneg %p63
        $region42: #{backbone_forward.1} parent=39 // pred_check_branch
          %229 = sbr.rel (%p227) target = $region44
        $region43: #{backbone_forward.1} parent=39 // pred_region
          %231 = dma.done [#allocation3], 128
        $region44: #{backbone_forward.1} parent=39 // pred_fallthru
          _
        // Predicated region
        $region45: #{backbone_forward.1} parent=39 // pred_check
          %p232 = pneg %p105
        $region46: #{backbone_forward.1} parent=39 // pred_check_branch
          %234 = sbr.rel (%p232) target = $region48
        $region47: #{backbone_forward.1} parent=39 // pred_region
          %236 = dma.done [#allocation6], 49152
        $region48: #{backbone_forward.1} parent=39 // pred_fallthru
          _
        // Predicated region
        $region49: #{backbone_forward.1} parent=39 // pred_check
          %p237 = pneg %p126
        $region50: #{backbone_forward.1} parent=39 // pred_check_branch
          %239 = sbr.rel (%p237) target = $region52
        $region51: #{backbone_forward.1} parent=39 // pred_region
          %241 = dma.done [#allocation6], 16
        $region52: #{backbone_forward.1} parent=39 // pred_fallthru
          _
        %p242 = scmp.lt.s32.totalorder %s21, 1
        %s243 = scalar_select %p242, %s21, 1
        %s244 = smul.addr %s243, 3
        %s245 = smul.addr %s244, 8
        %s246 = scalar_lea.vmem %s0, %s245
        %p247 = pneg %p42
        %p248 = pneg %p39
        %p249 = pneg %p63
        %p250 = pneg %p60
        %p251 = pneg %p84
        %p252 = pneg %p81
        %p253 = pneg %p105
        %p254 = pneg %p102
        %p255 = pneg %p126
        %p256 = pneg %p123
        %p257 = pneg %p152
        %p258 = pneg %p149
        %s259 = sand.u32 %s139, 1
        %s260 = scalar_lea.sflag [#allocation4], %s259
        %s261 = sand.u32 %s139, 1
        %s262 = scalar_lea.vmem [#allocation8], %s261
        %p263 = scmp.lt.s32.totalorder %s21, 1
        %s264 = scalar_select %p263, %s21, 1
        %s265 = smul.addr %s264, 3
        %s266 = smul.addr %s265, 8
        %s267 = scalar_lea.vmem %s0, %s266
        %v268 = vld [vmem:[%s267] sm:$0xff]
        %v269 = vld [vmem:[%s267 + $0x8] sm:$0xff]
        %v270 = vld [vmem:[%s267 + $0x10] sm:$0xff]
        %271 = vrot.lane.b32.xlu0 %v268, 127
        %v272 = vpop.permute.xlu0 %271
        %273 = vrot.lane.b32.xlu0 %v269, 127
        %v274 = vpop.permute.xlu0 %273
        %275 = vrot.lane.b32.xlu0 %v270, 127
        %v276 = vpop.permute.xlu0 %275
        %v277 = vlaneseq
        %v278 = vand.u32 %v277, 127
        %vm279 = vcmp.lt.s32.totalorder %v278, 127
        %v280 = vsel %vm279, %v274, %v276
        %v281 = vsel %vm279, %v272, %v274
        %v282 = vsel %vm279, %v276, %v272
        %283 = vrot.lane.b32.xlu0 %v268, 126
        %v284 = vpop.permute.xlu0 %283
        %285 = vrot.lane.b32.xlu0 %v269, 126
        %v286 = vpop.permute.xlu0 %285
        %287 = vrot.lane.b32.xlu0 %v270, 126
        %v288 = vpop.permute.xlu0 %287
        %vm289 = vcmp.lt.s32.totalorder %v278, 126
        %v290 = vsel %vm289, %v286, %v288
        %v291 = vsel %vm289, %v284, %v286
        %v292 = vsel %vm289, %v288, %v284
        %293 = vrot.lane.b32.xlu0 %v268, 110
        %v294 = vpop.permute.xlu0 %293
        %295 = vrot.lane.b32.xlu0 %v269, 110
        %v296 = vpop.permute.xlu0 %295
        %297 = vrot.lane.b32.xlu0 %v270, 110
        %v298 = vpop.permute.xlu0 %297
        %vm299 = vcmp.lt.s32.totalorder %v278, 110
        %v300 = vsel %vm299, %v296, %v298
        %v301 = vsel %vm299, %v294, %v296
        %v302 = vsel %vm299, %v298, %v294
        %303 = vrot.lane.b32.xlu0 %v268, 109
        %v304 = vpop.permute.xlu0 %303
        %305 = vrot.lane.b32.xlu0 %v269, 109
        %v306 = vpop.permute.xlu0 %305
        %307 = vrot.lane.b32.xlu0 %v270, 109
        %v308 = vpop.permute.xlu0 %307
        %vm309 = vcmp.lt.s32.totalorder %v278, 109
        %v310 = vsel %vm309, %v306, %v308
        %v311 = vsel %vm309, %v304, %v306
        %v312 = vsel %vm309, %v308, %v304
        %313 = vrot.lane.b32.xlu0 %v268, 108
        %v314 = vpop.permute.xlu0 %313
        %315 = vrot.lane.b32.xlu0 %v269, 108
        %v316 = vpop.permute.xlu0 %315
        %317 = vrot.lane.b32.xlu0 %v270, 108
        %v318 = vpop.permute.xlu0 %317
        %vm319 = vcmp.lt.s32.totalorder %v278, 108
        %v320 = vsel %vm319, %v316, %v318
        %v321 = vsel %vm319, %v314, %v316
        %v322 = vsel %vm319, %v318, %v314
        %323 = vrot.lane.b32.xlu0 %v268, 92
        %v324 = vpop.permute.xlu0 %323
        %325 = vrot.lane.b32.xlu0 %v269, 92
        %v326 = vpop.permute.xlu0 %325
        %327 = vrot.lane.b32.xlu0 %v270, 92
        %v328 = vpop.permute.xlu0 %327
        %vm329 = vcmp.lt.s32.totalorder %v278, 92
        %v330 = vsel %vm329, %v326, %v328
        %v331 = vsel %vm329, %v324, %v326
        %v332 = vsel %vm329, %v328, %v324
        %333 = vrot.lane.b32.xlu0 %v268, 91
        %v334 = vpop.permute.xlu0 %333
        %335 = vrot.lane.b32.xlu0 %v269, 91
        %v336 = vpop.permute.xlu0 %335
        %337 = vrot.lane.b32.xlu0 %v270, 91
        %v338 = vpop.permute.xlu0 %337
        %vm339 = vcmp.lt.s32.totalorder %v278, 91
        %v340 = vsel %vm339, %v336, %v338
        %v341 = vsel %vm339, %v334, %v336
        %v342 = vsel %vm339, %v338, %v334
        %343 = vrot.lane.b32.xlu0 %v268, 90
        %v344 = vpop.permute.xlu0 %343
        %345 = vrot.lane.b32.xlu0 %v269, 90
        %v346 = vpop.permute.xlu0 %345
        %347 = vrot.lane.b32.xlu0 %v270, 90
        %v348 = vpop.permute.xlu0 %347
        %vm349 = vcmp.lt.s32.totalorder %v278, 90
        %v350 = vsel %vm349, %v346, %v348
        %v351 = vsel %vm349, %v344, %v346
        %v352 = vsel %vm349, %v348, %v344
        %v353 = vld [vmem:[#allocation2] sm:$0xff]
        %v354 = vld [vmem:[%s2] sm:$0xff]
        %356 = vset.pattern.permute.xlu0 0
        %357 = vperm.xlu0 %356, %v354
        %v358 = vpop.permute.xlu0 %357
        %vm360 = vcmask 588800
        %v362 = vsel %vm360, %v353, 0
        %364 = vmatpush.msra.mxu0 0.0
        %365 = vmatpush.msra.mxu0 0.0
        %366 = vmatpush.msra.mxu0 0.0
        %367 = vmatpush.msra.mxu0 0.0
        %368 = vmatpush.msra.mxu0 0.0
        %369 = vmatpush.msra.mxu0 0.0
        %370 = vmatpush.msra.mxu0 0.0
        %371 = vmatpush.msra.mxu0 %v351
        %372 = vmatpush.msra.mxu0 %v341
        %373 = vmatpush.msra.mxu0 %v331
        %374 = vmatpush.msra.mxu0 %v321
        %375 = vmatpush.msra.mxu0 %v311
        %376 = vmatpush.msra.mxu0 %v301
        %377 = vmatpush.msra.mxu0 %v291
        %378 = vmatpush.msra.mxu0 %v281
        %379 = vmatpush.msra.mxu0 %v268
        %380 = vmatmul.f32.gmra.mxu0 %v362
        %v381 = vpop.f32.mrf.mxu0
        %v382 = vadd.f32 %v358, %v381
        %383 = vdwg.mxu0
        %384 = vmatpush.msra.mxu0 0.0
        %385 = vmatpush.msra.mxu0 0.0
        %386 = vmatpush.msra.mxu0 0.0
        %387 = vmatpush.msra.mxu0 0.0
        %388 = vmatpush.msra.mxu0 0.0
        %389 = vmatpush.msra.mxu0 0.0
        %390 = vmatpush.msra.mxu0 0.0
        %391 = vmatpush.msra.mxu0 %v350
        %392 = vmatpush.msra.mxu0 %v340
        %393 = vmatpush.msra.mxu0 %v330
        %394 = vmatpush.msra.mxu0 %v320
        %395 = vmatpush.msra.mxu0 %v310
        %396 = vmatpush.msra.mxu0 %v300
        %397 = vmatpush.msra.mxu0 %v290
        %398 = vmatpush.msra.mxu0 %v280
        %399 = vmatpush.msra.mxu0 %v269
        %400 = vmatmul.f32.gmra.mxu0 %v362
        %v401 = vpop.f32.mrf.mxu0
        %v402 = vadd.f32 %v358, %v401
        %403 = vdwg.mxu0
        %404 = vmatpush.msra.mxu0 0.0
        %405 = vmatpush.msra.mxu0 0.0
        %406 = vmatpush.msra.mxu0 0.0
        %407 = vmatpush.msra.mxu0 0.0
        %408 = vmatpush.msra.mxu0 0.0
        %409 = vmatpush.msra.mxu0 0.0
        %410 = vmatpush.msra.mxu0 0.0
        %411 = vmatpush.msra.mxu0 %v352
        %412 = vmatpush.msra.mxu0 %v342
        %413 = vmatpush.msra.mxu0 %v332
        %414 = vmatpush.msra.mxu0 %v322
        %415 = vmatpush.msra.mxu0 %v312
        %416 = vmatpush.msra.mxu0 %v302
        %417 = vmatpush.msra.mxu0 %v292
        %418 = vmatpush.msra.mxu0 %v282
        %419 = vmatpush.msra.mxu0 %v270
        %420 = vmatmul.f32.gmra.mxu0 %v362
        %v421 = vpop.f32.mrf.mxu0
        %v422 = vadd.f32 %v358, %v421
        %423 = vdwg.mxu0
        %v424 = vmax.f32 %v382, 0.0
        %v425 = vmax.f32 %v402, 0.0
        %v426 = vmax.f32 %v422, 0.0
        %v427 = vrot.slane %v424, 4
        %vm428 = vcmask 1047556
        %v429 = vsel %vm428, 0.0, %v427
        %v431 = vunpack.c.l.s4 1983009808
        %v432 = vunpack.c.0.s8 %v431
        %v433 = vperm.slane %v424, %v432
        %v435 = vunpack.c.l.s4 1983009808
        %v436 = vunpack.c.0.s8 %v435
        %v437 = vperm.slane %v429, %v436
        %v438 = vrot.slane %v433, 4
        %v439 = vsel %vm428, 0.0, %v438
        %v441 = vunpack.c.l.s4 1934713408
        %v442 = vunpack.c.0.s8 %v441
        %v443 = vperm.slane %v433, %v442
        %v445 = vunpack.c.l.s4 1934713408
        %v446 = vunpack.c.0.s8 %v445
        %v447 = vperm.slane %v439, %v446
        %v448 = vrot.slane %v437, 4
        %v449 = vsel %vm428, 0.0, %v448
        %v451 = vunpack.c.l.s4 1934713408
        %v452 = vunpack.c.0.s8 %v451
        %v453 = vperm.slane %v437, %v452
        %v455 = vunpack.c.l.s4 1934713408
        %v456 = vunpack.c.0.s8 %v455
        %v457 = vperm.slane %v449, %v456
        %v458 = vrot.slane %v443, 4
        %v459 = vsel %vm428, 0.0, %v458
        %v460 = vrot.slane %v447, 4
        %v461 = vsel %vm428, 0.0, %v460
        %v462 = vrot.slane %v453, 4
        %v463 = vsel %vm428, 0.0, %v462
        %v464 = vrot.slane %v457, 4
        %v465 = vsel %vm428, 0.0, %v464
        %v466 = vrot.slane %v425, 4
        %v467 = vsel %vm428, 0.0, %v466
        %v469 = vunpack.c.l.s4 1983009808
        %v470 = vunpack.c.0.s8 %v469
        %v471 = vperm.slane %v425, %v470
        %v473 = vunpack.c.l.s4 1983009808
        %v474 = vunpack.c.0.s8 %v473
        %v475 = vperm.slane %v467, %v474
        %v476 = vrot.slane %v471, 4
        %v477 = vsel %vm428, 0.0, %v476
        %v479 = vunpack.c.l.s4 1934713408
        %v480 = vunpack.c.0.s8 %v479
        %v481 = vperm.slane %v471, %v480
        %v483 = vunpack.c.l.s4 1934713408
        %v484 = vunpack.c.0.s8 %v483
        %v485 = vperm.slane %v477, %v484
        %v486 = vrot.slane %v475, 4
        %v487 = vsel %vm428, 0.0, %v486
        %v489 = vunpack.c.l.s4 1934713408
        %v490 = vunpack.c.0.s8 %v489
        %v491 = vperm.slane %v475, %v490
        %v493 = vunpack.c.l.s4 1934713408
        %v494 = vunpack.c.0.s8 %v493
        %v495 = vperm.slane %v487, %v494
        %v496 = vrot.slane %v481, 4
        %v497 = vsel %vm428, 0.0, %v496
        %v498 = vrot.slane %v485, 4
        %v499 = vsel %vm428, 0.0, %v498
        %v500 = vrot.slane %v491, 4
        %v501 = vsel %vm428, 0.0, %v500
        %v502 = vrot.slane %v495, 4
        %v503 = vsel %vm428, 0.0, %v502
        %v504 = vrot.slane %v426, 4
        %v505 = vsel %vm428, 0.0, %v504
        %v507 = vunpack.c.l.s4 1983009808
        %v508 = vunpack.c.0.s8 %v507
        %v509 = vperm.slane %v426, %v508
        %v511 = vunpack.c.l.s4 1983009808
        %v512 = vunpack.c.0.s8 %v511
        %v513 = vperm.slane %v505, %v512
        %v514 = vrot.slane %v509, 4
        %v515 = vsel %vm428, 0.0, %v514
        %v517 = vunpack.c.l.s4 1934713408
        %v518 = vunpack.c.0.s8 %v517
        %v519 = vperm.slane %v509, %v518
        %v521 = vunpack.c.l.s4 1934713408
        %v522 = vunpack.c.0.s8 %v521
        %v523 = vperm.slane %v515, %v522
        %v524 = vrot.slane %v513, 4
        %v525 = vsel %vm428, 0.0, %v524
        %v527 = vunpack.c.l.s4 1934713408
        %v528 = vunpack.c.0.s8 %v527
        %v529 = vperm.slane %v513, %v528
        %v531 = vunpack.c.l.s4 1934713408
        %v532 = vunpack.c.0.s8 %v531
        %v533 = vperm.slane %v525, %v532
        %v534 = vrot.slane %v519, 4
        %v535 = vsel %vm428, 0.0, %v534
        %v536 = vrot.slane %v523, 4
        %v537 = vsel %vm428, 0.0, %v536
        %v538 = vrot.slane %v529, 4
        %v539 = vsel %vm428, 0.0, %v538
        %v540 = vrot.slane %v533, 4
        %v541 = vsel %vm428, 0.0, %v540
        %v542 = vld [vmem:[#allocation5] sm:$0xff]
        %v543 = vld [vmem:[#allocation5 + $0x8] sm:$0xff]
        %v544 = vld [vmem:[#allocation5 + $0x10] sm:$0xff]
        %v545 = vld [vmem:[#allocation5 + $0x18] sm:$0xff]
        %v546 = vld [vmem:[#allocation5 + $0x20] sm:$0xff]
        %v547 = vld [vmem:[#allocation5 + $0x28] sm:$0xff]
        %v548 = vld [vmem:[#allocation5 + $0x30] sm:$0xff]
        %v549 = vld [vmem:[#allocation5 + $0x38] sm:$0xff]
        %v550 = vld [vmem:[#allocation5 + $0x40] sm:$0xff]
        %v551 = vld [vmem:[#allocation5 + $0x48] sm:$0xff]
        %v552 = vld [vmem:[#allocation5 + $0x50] sm:$0xff]
        %v553 = vld [vmem:[#allocation5 + $0x58] sm:$0xff]
        %v554 = vld [vmem:[#allocation5 + $0x60] sm:$0xff]
        %v555 = vld [vmem:[#allocation5 + $0x68] sm:$0xff]
        %v556 = vld [vmem:[#allocation5 + $0x70] sm:$0xff]
        %v557 = vld [vmem:[#allocation5 + $0x78] sm:$0xff]
        %v558 = vld [vmem:[#allocation5 + $0x80] sm:$0xff]
        %v559 = vld [vmem:[#allocation5 + $0x88] sm:$0xff]
        %v560 = vld [vmem:[#allocation5 + $0x90] sm:$0xff]
        %v561 = vld [vmem:[#allocation5 + $0x98] sm:$0xff]
        %v562 = vld [vmem:[#allocation5 + $0xa0] sm:$0xff]
        %v563 = vld [vmem:[#allocation5 + $0xa8] sm:$0xff]
        %v564 = vld [vmem:[#allocation5 + $0xb0] sm:$0xff]
        %v565 = vld [vmem:[#allocation5 + $0xb8] sm:$0xff]
        %v566 = vld [vmem:[#allocation5 + $0xc0] sm:$0xff]
        %v567 = vld [vmem:[#allocation5 + $0xc8] sm:$0xff]
        %v568 = vld [vmem:[#allocation5 + $0xd0] sm:$0xff]
        %v569 = vld [vmem:[#allocation5 + $0xd8] sm:$0xff]
        %v570 = vld [vmem:[#allocation5 + $0xe0] sm:$0xff]
        %v571 = vld [vmem:[#allocation5 + $0xe8] sm:$0xff]
        %v572 = vld [vmem:[#allocation5 + $0xf0] sm:$0xff]
        %v573 = vld [vmem:[#allocation5 + $0xf8] sm:$0xff]
        %v574 = vld [vmem:[#allocation5 + $0x100] sm:$0xff]
        %v575 = vld [vmem:[#allocation5 + $0x108] sm:$0xff]
        %v576 = vld [vmem:[#allocation5 + $0x110] sm:$0xff]
        %v577 = vld [vmem:[#allocation5 + $0x118] sm:$0xff]
        %v578 = vld [vmem:[#allocation5 + $0x120] sm:$0xff]
        %v579 = vld [vmem:[#allocation5 + $0x128] sm:$0xff]
        %v580 = vld [vmem:[#allocation5 + $0x130] sm:$0xff]
        %v581 = vld [vmem:[#allocation5 + $0x138] sm:$0xff]
        %v582 = vld [vmem:[#allocation5 + $0x140] sm:$0xff]
        %v583 = vld [vmem:[#allocation5 + $0x148] sm:$0xff]
        %v584 = vld [vmem:[#allocation5 + $0x150] sm:$0xff]
        %v585 = vld [vmem:[#allocation5 + $0x158] sm:$0xff]
        %v586 = vld [vmem:[#allocation5 + $0x160] sm:$0xff]
        %v587 = vld [vmem:[#allocation5 + $0x168] sm:$0xff]
        %v588 = vld [vmem:[#allocation5 + $0x170] sm:$0xff]
        %v589 = vld [vmem:[#allocation5 + $0x178] sm:$0xff]
        %v590 = vld [vmem:[#allocation5 + $0x180] sm:$0xff]
        %v591 = vld [vmem:[#allocation5 + $0x188] sm:$0xff]
        %v592 = vld [vmem:[#allocation5 + $0x190] sm:$0xff]
        %v593 = vld [vmem:[#allocation5 + $0x198] sm:$0xff]
        %v594 = vld [vmem:[#allocation5 + $0x1a0] sm:$0xff]
        %v595 = vld [vmem:[#allocation5 + $0x1a8] sm:$0xff]
        %v596 = vld [vmem:[#allocation5 + $0x1b0] sm:$0xff]
        %v597 = vld [vmem:[#allocation5 + $0x1b8] sm:$0xff]
        %v598 = vld [vmem:[#allocation5 + $0x1c0] sm:$0xff]
        %v599 = vld [vmem:[#allocation5 + $0x1c8] sm:$0xff]
        %v600 = vld [vmem:[#allocation5 + $0x1d0] sm:$0xff]
        %v601 = vld [vmem:[#allocation5 + $0x1d8] sm:$0xff]
        %v602 = vld [vmem:[#allocation5 + $0x1e0] sm:$0xff]
        %v603 = vld [vmem:[#allocation5 + $0x1e8] sm:$0xff]
        %v604 = vld [vmem:[#allocation5 + $0x1f0] sm:$0xff]
        %v605 = vld [vmem:[#allocation5 + $0x1f8] sm:$0xff]
        %v606 = vld [vmem:[#allocation5 + $0x200] sm:$0xff]
        %v607 = vld [vmem:[#allocation5 + $0x208] sm:$0xff]
        %v608 = vld [vmem:[#allocation5 + $0x210] sm:$0xff]
        %v609 = vld [vmem:[#allocation5 + $0x218] sm:$0xff]
        %v610 = vld [vmem:[#allocation5 + $0x220] sm:$0xff]
        %v611 = vld [vmem:[#allocation5 + $0x228] sm:$0xff]
        %v612 = vld [vmem:[#allocation5 + $0x230] sm:$0xff]
        %v613 = vld [vmem:[#allocation5 + $0x238] sm:$0xff]
        %v614 = vld [vmem:[#allocation5 + $0x240] sm:$0xff]
        %v615 = vld [vmem:[#allocation5 + $0x248] sm:$0xff]
        %v616 = vld [vmem:[#allocation5 + $0x250] sm:$0xff]
        %v617 = vld [vmem:[#allocation5 + $0x258] sm:$0xff]
        %v618 = vld [vmem:[#allocation5 + $0x260] sm:$0xff]
        %v619 = vld [vmem:[#allocation5 + $0x268] sm:$0xff]
        %v620 = vld [vmem:[#allocation5 + $0x270] sm:$0xff]
        %v621 = vld [vmem:[#allocation5 + $0x278] sm:$0xff]
        %v622 = vld [vmem:[#allocation5 + $0x280] sm:$0xff]
        %v623 = vld [vmem:[#allocation5 + $0x288] sm:$0xff]
        %v624 = vld [vmem:[#allocation5 + $0x290] sm:$0xff]
        %v625 = vld [vmem:[#allocation5 + $0x298] sm:$0xff]
        %v626 = vld [vmem:[#allocation5 + $0x2a0] sm:$0xff]
        %v627 = vld [vmem:[#allocation5 + $0x2a8] sm:$0xff]
        %v628 = vld [vmem:[#allocation5 + $0x2b0] sm:$0xff]
        %v629 = vld [vmem:[#allocation5 + $0x2b8] sm:$0xff]
        %v630 = vld [vmem:[#allocation5 + $0x2c0] sm:$0xff]
        %v631 = vld [vmem:[#allocation5 + $0x2c8] sm:$0xff]
        %v632 = vld [vmem:[#allocation5 + $0x2d0] sm:$0xff]
        %v633 = vld [vmem:[#allocation5 + $0x2d8] sm:$0xff]
        %v634 = vld [vmem:[#allocation5 + $0x2e0] sm:$0xff]
        %v635 = vld [vmem:[#allocation5 + $0x2e8] sm:$0xff]
        %v636 = vld [vmem:[#allocation5 + $0x2f0] sm:$0xff]
        %v637 = vld [vmem:[#allocation5 + $0x2f8] sm:$0xff]
        %v638 = vld [vmem:[#allocation5 + $0x300] sm:$0xff]
        %v639 = vld [vmem:[#allocation5 + $0x308] sm:$0xff]
        %v640 = vld [vmem:[#allocation5 + $0x310] sm:$0xff]
        %v641 = vld [vmem:[#allocation5 + $0x318] sm:$0xff]
        %v642 = vld [vmem:[#allocation5 + $0x320] sm:$0xff]
        %v643 = vld [vmem:[#allocation5 + $0x328] sm:$0xff]
        %v644 = vld [vmem:[#allocation5 + $0x330] sm:$0xff]
        %v645 = vld [vmem:[#allocation5 + $0x338] sm:$0xff]
        %v646 = vld [vmem:[#allocation5 + $0x340] sm:$0xff]
        %v647 = vld [vmem:[#allocation5 + $0x348] sm:$0xff]
        %v648 = vld [vmem:[#allocation5 + $0x350] sm:$0xff]
        %v649 = vld [vmem:[#allocation5 + $0x358] sm:$0xff]
        %v650 = vld [vmem:[#allocation5 + $0x360] sm:$0xff]
        %v651 = vld [vmem:[#allocation5 + $0x368] sm:$0xff]
        %v652 = vld [vmem:[#allocation5 + $0x370] sm:$0xff]
        %v653 = vld [vmem:[#allocation5 + $0x378] sm:$0xff]
        %v654 = vld [vmem:[#allocation5 + $0x380] sm:$0xff]
        %v655 = vld [vmem:[#allocation5 + $0x388] sm:$0xff]
        %v656 = vld [vmem:[#allocation5 + $0x390] sm:$0xff]
        %v657 = vld [vmem:[#allocation5 + $0x398] sm:$0xff]
        %v658 = vld [vmem:[#allocation5 + $0x3a0] sm:$0xff]
        %v659 = vld [vmem:[#allocation5 + $0x3a8] sm:$0xff]
        %v660 = vld [vmem:[#allocation5 + $0x3b0] sm:$0xff]
        %v661 = vld [vmem:[#allocation5 + $0x3b8] sm:$0xff]
        %v662 = vld [vmem:[#allocation5 + $0x3c0] sm:$0xff]
        %v663 = vld [vmem:[#allocation5 + $0x3c8] sm:$0xff]
        %v664 = vld [vmem:[#allocation5 + $0x3d0] sm:$0xff]
        %v665 = vld [vmem:[#allocation5 + $0x3d8] sm:$0xff]
        %v666 = vld [vmem:[#allocation5 + $0x3e0] sm:$0xff]
        %v667 = vld [vmem:[#allocation5 + $0x3e8] sm:$0xff]
        %v668 = vld [vmem:[#allocation5 + $0x3f0] sm:$0xff]
        %v669 = vld [vmem:[#allocation5 + $0x3f8] sm:$0xff]
        %v670 = vld [vmem:[#allocation5 + $0x400] sm:$0xff]
        %v671 = vld [vmem:[#allocation5 + $0x408] sm:$0xff]
        %v672 = vld [vmem:[#allocation5 + $0x410] sm:$0xff]
        %v673 = vld [vmem:[#allocation5 + $0x418] sm:$0xff]
        %v674 = vld [vmem:[#allocation5 + $0x420] sm:$0xff]
        %v675 = vld [vmem:[#allocation5 + $0x428] sm:$0xff]
        %v676 = vld [vmem:[#allocation5 + $0x430] sm:$0xff]
        %v677 = vld [vmem:[#allocation5 + $0x438] sm:$0xff]
        %v678 = vld [vmem:[#allocation5 + $0x440] sm:$0xff]
        %v679 = vld [vmem:[#allocation5 + $0x448] sm:$0xff]
        %v680 = vld [vmem:[#allocation5 + $0x450] sm:$0xff]
        %v681 = vld [vmem:[#allocation5 + $0x458] sm:$0xff]
        %v682 = vld [vmem:[#allocation5 + $0x460] sm:$0xff]
        %v683 = vld [vmem:[#allocation5 + $0x468] sm:$0xff]
        %v684 = vld [vmem:[#allocation5 + $0x470] sm:$0xff]
        %v685 = vld [vmem:[#allocation5 + $0x478] sm:$0xff]
        %v686 = vld [vmem:[#allocation5 + $0x480] sm:$0xff]
        %v687 = vld [vmem:[#allocation5 + $0x488] sm:$0xff]
        %v688 = vld [vmem:[#allocation5 + $0x490] sm:$0xff]
        %v689 = vld [vmem:[#allocation5 + $0x498] sm:$0xff]
        %v690 = vld [vmem:[#allocation5 + $0x4a0] sm:$0xff]
        %v691 = vld [vmem:[#allocation5 + $0x4a8] sm:$0xff]
        %v692 = vld [vmem:[#allocation5 + $0x4b0] sm:$0xff]
        %v693 = vld [vmem:[#allocation5 + $0x4b8] sm:$0xff]
        %v694 = vld [vmem:[#allocation5 + $0x4c0] sm:$0xff]
        %v695 = vld [vmem:[#allocation5 + $0x4c8] sm:$0xff]
        %v696 = vld [vmem:[#allocation5 + $0x4d0] sm:$0xff]
        %v697 = vld [vmem:[#allocation5 + $0x4d8] sm:$0xff]
        %v698 = vld [vmem:[#allocation5 + $0x4e0] sm:$0xff]
        %v699 = vld [vmem:[#allocation5 + $0x4e8] sm:$0xff]
        %v700 = vld [vmem:[#allocation5 + $0x4f0] sm:$0xff]
        %v701 = vld [vmem:[#allocation5 + $0x4f8] sm:$0xff]
        %v702 = vld [vmem:[#allocation5 + $0x500] sm:$0xff]
        %v703 = vld [vmem:[#allocation5 + $0x508] sm:$0xff]
        %v704 = vld [vmem:[#allocation5 + $0x510] sm:$0xff]
        %v705 = vld [vmem:[#allocation5 + $0x518] sm:$0xff]
        %v706 = vld [vmem:[#allocation5 + $0x520] sm:$0xff]
        %v707 = vld [vmem:[#allocation5 + $0x528] sm:$0xff]
        %v708 = vld [vmem:[#allocation5 + $0x530] sm:$0xff]
        %v709 = vld [vmem:[#allocation5 + $0x538] sm:$0xff]
        %v710 = vld [vmem:[#allocation5 + $0x540] sm:$0xff]
        %v711 = vld [vmem:[#allocation5 + $0x548] sm:$0xff]
        %v712 = vld [vmem:[#allocation5 + $0x550] sm:$0xff]
        %v713 = vld [vmem:[#allocation5 + $0x558] sm:$0xff]
        %v714 = vld [vmem:[#allocation5 + $0x560] sm:$0xff]
        %v715 = vld [vmem:[#allocation5 + $0x568] sm:$0xff]
        %v716 = vld [vmem:[#allocation5 + $0x570] sm:$0xff]
        %v717 = vld [vmem:[#allocation5 + $0x578] sm:$0xff]
        %v718 = vld [vmem:[#allocation5 + $0x580] sm:$0xff]
        %v719 = vld [vmem:[#allocation5 + $0x588] sm:$0xff]
        %v720 = vld [vmem:[#allocation5 + $0x590] sm:$0xff]
        %v721 = vld [vmem:[#allocation5 + $0x598] sm:$0xff]
        %v722 = vld [vmem:[#allocation5 + $0x5a0] sm:$0xff]
        %v723 = vld [vmem:[#allocation5 + $0x5a8] sm:$0xff]
        %v724 = vld [vmem:[#allocation5 + $0x5b0] sm:$0xff]
        %v725 = vld [vmem:[#allocation5 + $0x5b8] sm:$0xff]
        %v726 = vld [vmem:[#allocation5 + $0x5c0] sm:$0xff]
        %v727 = vld [vmem:[#allocation5 + $0x5c8] sm:$0xff]
        %v728 = vld [vmem:[#allocation5 + $0x5d0] sm:$0xff]
        %v729 = vld [vmem:[#allocation5 + $0x5d8] sm:$0xff]
        %v730 = vld [vmem:[#allocation5 + $0x5e0] sm:$0xff]
        %v731 = vld [vmem:[#allocation5 + $0x5e8] sm:$0xff]
        %v732 = vld [vmem:[#allocation5 + $0x5f0] sm:$0xff]
        %v733 = vld [vmem:[#allocation5 + $0x5f8] sm:$0xff]
        %v734 = vld [vmem:[#allocation5 + $0x600] sm:$0xff]
        %v735 = vld [vmem:[#allocation5 + $0x608] sm:$0xff]
        %v736 = vld [vmem:[#allocation5 + $0x610] sm:$0xff]
        %v737 = vld [vmem:[#allocation5 + $0x618] sm:$0xff]
        %v738 = vld [vmem:[#allocation5 + $0x620] sm:$0xff]
        %v739 = vld [vmem:[#allocation5 + $0x628] sm:$0xff]
        %v740 = vld [vmem:[#allocation5 + $0x630] sm:$0xff]
        %v741 = vld [vmem:[#allocation5 + $0x638] sm:$0xff]
        %v742 = vld [vmem:[#allocation5 + $0x640] sm:$0xff]
        %v743 = vld [vmem:[#allocation5 + $0x648] sm:$0xff]
        %v744 = vld [vmem:[#allocation5 + $0x650] sm:$0xff]
        %v745 = vld [vmem:[#allocation5 + $0x658] sm:$0xff]
        %v746 = vld [vmem:[#allocation5 + $0x660] sm:$0xff]
        %v747 = vld [vmem:[#allocation5 + $0x668] sm:$0xff]
        %v748 = vld [vmem:[#allocation5 + $0x670] sm:$0xff]
        %v749 = vld [vmem:[#allocation5 + $0x678] sm:$0xff]
        %v750 = vld [vmem:[#allocation5 + $0x680] sm:$0xff]
        %v751 = vld [vmem:[#allocation5 + $0x688] sm:$0xff]
        %v752 = vld [vmem:[#allocation5 + $0x690] sm:$0xff]
        %v753 = vld [vmem:[#allocation5 + $0x698] sm:$0xff]
        %v754 = vld [vmem:[#allocation5 + $0x6a0] sm:$0xff]
        %v755 = vld [vmem:[#allocation5 + $0x6a8] sm:$0xff]
        %v756 = vld [vmem:[#allocation5 + $0x6b0] sm:$0xff]
        %v757 = vld [vmem:[#allocation5 + $0x6b8] sm:$0xff]
        %v758 = vld [vmem:[#allocation5 + $0x6c0] sm:$0xff]
        %v759 = vld [vmem:[#allocation5 + $0x6c8] sm:$0xff]
        %v760 = vld [vmem:[#allocation5 + $0x6d0] sm:$0xff]
        %v761 = vld [vmem:[#allocation5 + $0x6d8] sm:$0xff]
        %v762 = vld [vmem:[#allocation5 + $0x6e0] sm:$0xff]
        %v763 = vld [vmem:[#allocation5 + $0x6e8] sm:$0xff]
        %v764 = vld [vmem:[#allocation5 + $0x6f0] sm:$0xff]
        %v765 = vld [vmem:[#allocation5 + $0x6f8] sm:$0xff]
        %v766 = vld [vmem:[#allocation5 + $0x700] sm:$0xff]
        %v767 = vld [vmem:[#allocation5 + $0x708] sm:$0xff]
        %v768 = vld [vmem:[#allocation5 + $0x710] sm:$0xff]
        %v769 = vld [vmem:[#allocation5 + $0x718] sm:$0xff]
        %v770 = vld [vmem:[#allocation5 + $0x720] sm:$0xff]
        %v771 = vld [vmem:[#allocation5 + $0x728] sm:$0xff]
        %v772 = vld [vmem:[#allocation5 + $0x730] sm:$0xff]
        %v773 = vld [vmem:[#allocation5 + $0x738] sm:$0xff]
        %v774 = vld [vmem:[#allocation5 + $0x740] sm:$0xff]
        %v775 = vld [vmem:[#allocation5 + $0x748] sm:$0xff]
        %v776 = vld [vmem:[#allocation5 + $0x750] sm:$0xff]
        %v777 = vld [vmem:[#allocation5 + $0x758] sm:$0xff]
        %v778 = vld [vmem:[#allocation5 + $0x760] sm:$0xff]
        %v779 = vld [vmem:[#allocation5 + $0x768] sm:$0xff]
        %v780 = vld [vmem:[#allocation5 + $0x770] sm:$0xff]
        %v781 = vld [vmem:[#allocation5 + $0x778] sm:$0xff]
        %v782 = vld [vmem:[#allocation5 + $0x780] sm:$0xff]
        %v783 = vld [vmem:[#allocation5 + $0x788] sm:$0xff]
        %v784 = vld [vmem:[#allocation5 + $0x790] sm:$0xff]
        %v785 = vld [vmem:[#allocation5 + $0x798] sm:$0xff]
        %v786 = vld [vmem:[#allocation5 + $0x7a0] sm:$0xff]
        %v787 = vld [vmem:[#allocation5 + $0x7a8] sm:$0xff]
        %v788 = vld [vmem:[#allocation5 + $0x7b0] sm:$0xff]
        %v789 = vld [vmem:[#allocation5 + $0x7b8] sm:$0xff]
        %v790 = vld [vmem:[#allocation5 + $0x7c0] sm:$0xff]
        %v791 = vld [vmem:[#allocation5 + $0x7c8] sm:$0xff]
        %v792 = vld [vmem:[#allocation5 + $0x7d0] sm:$0xff]
        %v793 = vld [vmem:[#allocation5 + $0x7d8] sm:$0xff]
        %v794 = vld [vmem:[#allocation5 + $0x7e0] sm:$0xff]
        %v795 = vld [vmem:[#allocation5 + $0x7e8] sm:$0xff]
        %v796 = vld [vmem:[#allocation5 + $0x7f0] sm:$0xff]
        %v797 = vld [vmem:[#allocation5 + $0x7f8] sm:$0xff]
        %v798 = vld [vmem:[#allocation5 + $0x800] sm:$0xff]
        %v799 = vld [vmem:[#allocation5 + $0x808] sm:$0xff]
        %v800 = vld [vmem:[#allocation5 + $0x810] sm:$0xff]
        %v801 = vld [vmem:[#allocation5 + $0x818] sm:$0xff]
        %v802 = vld [vmem:[#allocation5 + $0x820] sm:$0xff]
        %v803 = vld [vmem:[#allocation5 + $0x828] sm:$0xff]
        %v804 = vld [vmem:[#allocation5 + $0x830] sm:$0xff]
        %v805 = vld [vmem:[#allocation5 + $0x838] sm:$0xff]
        %v806 = vld [vmem:[#allocation5 + $0x840] sm:$0xff]
        %v807 = vld [vmem:[#allocation5 + $0x848] sm:$0xff]
        %v808 = vld [vmem:[#allocation5 + $0x850] sm:$0xff]
        %v809 = vld [vmem:[#allocation5 + $0x858] sm:$0xff]
        %v810 = vld [vmem:[#allocation5 + $0x860] sm:$0xff]
        %v811 = vld [vmem:[#allocation5 + $0x868] sm:$0xff]
        %v812 = vld [vmem:[#allocation5 + $0x870] sm:$0xff]
        %v813 = vld [vmem:[#allocation5 + $0x878] sm:$0xff]
        %v814 = vld [vmem:[#allocation5 + $0x880] sm:$0xff]
        %v815 = vld [vmem:[#allocation5 + $0x888] sm:$0xff]
        %v816 = vld [vmem:[#allocation5 + $0x890] sm:$0xff]
        %v817 = vld [vmem:[#allocation5 + $0x898] sm:$0xff]
        %v818 = vld [vmem:[#allocation5 + $0x8a0] sm:$0xff]
        %v819 = vld [vmem:[#allocation5 + $0x8a8] sm:$0xff]
        %v820 = vld [vmem:[#allocation5 + $0x8b0] sm:$0xff]
        %v821 = vld [vmem:[#allocation5 + $0x8b8] sm:$0xff]
        %v822 = vld [vmem:[#allocation5 + $0x8c0] sm:$0xff]
        %v823 = vld [vmem:[#allocation5 + $0x8c8] sm:$0xff]
        %v824 = vld [vmem:[#allocation5 + $0x8d0] sm:$0xff]
        %v825 = vld [vmem:[#allocation5 + $0x8d8] sm:$0xff]
        %v826 = vld [vmem:[#allocation5 + $0x8e0] sm:$0xff]
        %v827 = vld [vmem:[#allocation5 + $0x8e8] sm:$0xff]
        %v828 = vld [vmem:[#allocation5 + $0x8f0] sm:$0xff]
        %v829 = vld [vmem:[#allocation5 + $0x8f8] sm:$0xff]
        %v830 = vld [vmem:[#allocation5 + $0x900] sm:$0xff]
        %v831 = vld [vmem:[#allocation5 + $0x908] sm:$0xff]
        %v832 = vld [vmem:[#allocation5 + $0x910] sm:$0xff]
        %v833 = vld [vmem:[#allocation5 + $0x918] sm:$0xff]
        %v834 = vld [vmem:[#allocation5 + $0x920] sm:$0xff]
        %v835 = vld [vmem:[#allocation5 + $0x928] sm:$0xff]
        %v836 = vld [vmem:[#allocation5 + $0x930] sm:$0xff]
        %v837 = vld [vmem:[#allocation5 + $0x938] sm:$0xff]
        %v838 = vld [vmem:[#allocation5 + $0x940] sm:$0xff]
        %v839 = vld [vmem:[#allocation5 + $0x948] sm:$0xff]
        %v840 = vld [vmem:[#allocation5 + $0x950] sm:$0xff]
        %v841 = vld [vmem:[#allocation5 + $0x958] sm:$0xff]
        %v842 = vld [vmem:[#allocation5 + $0x960] sm:$0xff]
        %v843 = vld [vmem:[#allocation5 + $0x968] sm:$0xff]
        %v844 = vld [vmem:[#allocation5 + $0x970] sm:$0xff]
        %v845 = vld [vmem:[#allocation5 + $0x978] sm:$0xff]
        %v846 = vld [vmem:[#allocation5 + $0x980] sm:$0xff]
        %v847 = vld [vmem:[#allocation5 + $0x988] sm:$0xff]
        %v848 = vld [vmem:[#allocation5 + $0x990] sm:$0xff]
        %v849 = vld [vmem:[#allocation5 + $0x998] sm:$0xff]
        %v850 = vld [vmem:[#allocation5 + $0x9a0] sm:$0xff]
        %v851 = vld [vmem:[#allocation5 + $0x9a8] sm:$0xff]
        %v852 = vld [vmem:[#allocation5 + $0x9b0] sm:$0xff]
        %v853 = vld [vmem:[#allocation5 + $0x9b8] sm:$0xff]
        %v854 = vld [vmem:[#allocation5 + $0x9c0] sm:$0xff]
        %v855 = vld [vmem:[#allocation5 + $0x9c8] sm:$0xff]
        %v856 = vld [vmem:[#allocation5 + $0x9d0] sm:$0xff]
        %v857 = vld [vmem:[#allocation5 + $0x9d8] sm:$0xff]
        %v858 = vld [vmem:[#allocation5 + $0x9e0] sm:$0xff]
        %v859 = vld [vmem:[#allocation5 + $0x9e8] sm:$0xff]
        %v860 = vld [vmem:[#allocation5 + $0x9f0] sm:$0xff]
        %v861 = vld [vmem:[#allocation5 + $0x9f8] sm:$0xff]
        %v862 = vld [vmem:[#allocation5 + $0xa00] sm:$0xff]
        %v863 = vld [vmem:[#allocation5 + $0xa08] sm:$0xff]
        %v864 = vld [vmem:[#allocation5 + $0xa10] sm:$0xff]
        %v865 = vld [vmem:[#allocation5 + $0xa18] sm:$0xff]
        %v866 = vld [vmem:[#allocation5 + $0xa20] sm:$0xff]
        %v867 = vld [vmem:[#allocation5 + $0xa28] sm:$0xff]
        %v868 = vld [vmem:[#allocation5 + $0xa30] sm:$0xff]
        %v869 = vld [vmem:[#allocation5 + $0xa38] sm:$0xff]
        %v870 = vld [vmem:[#allocation5 + $0xa40] sm:$0xff]
        %v871 = vld [vmem:[#allocation5 + $0xa48] sm:$0xff]
        %v872 = vld [vmem:[#allocation5 + $0xa50] sm:$0xff]
        %v873 = vld [vmem:[#allocation5 + $0xa58] sm:$0xff]
        %v874 = vld [vmem:[#allocation5 + $0xa60] sm:$0xff]
        %v875 = vld [vmem:[#allocation5 + $0xa68] sm:$0xff]
        %v876 = vld [vmem:[#allocation5 + $0xa70] sm:$0xff]
        %v877 = vld [vmem:[#allocation5 + $0xa78] sm:$0xff]
        %v878 = vld [vmem:[#allocation5 + $0xa80] sm:$0xff]
        %v879 = vld [vmem:[#allocation5 + $0xa88] sm:$0xff]
        %v880 = vld [vmem:[#allocation5 + $0xa90] sm:$0xff]
        %v881 = vld [vmem:[#allocation5 + $0xa98] sm:$0xff]
        %v882 = vld [vmem:[#allocation5 + $0xaa0] sm:$0xff]
        %v883 = vld [vmem:[#allocation5 + $0xaa8] sm:$0xff]
        %v884 = vld [vmem:[#allocation5 + $0xab0] sm:$0xff]
        %v885 = vld [vmem:[#allocation5 + $0xab8] sm:$0xff]
        %v886 = vld [vmem:[#allocation5 + $0xac0] sm:$0xff]
        %v887 = vld [vmem:[#allocation5 + $0xac8] sm:$0xff]
        %v888 = vld [vmem:[#allocation5 + $0xad0] sm:$0xff]
        %v889 = vld [vmem:[#allocation5 + $0xad8] sm:$0xff]
        %v890 = vld [vmem:[#allocation5 + $0xae0] sm:$0xff]
        %v891 = vld [vmem:[#allocation5 + $0xae8] sm:$0xff]
        %v892 = vld [vmem:[#allocation5 + $0xaf0] sm:$0xff]
        %v893 = vld [vmem:[#allocation5 + $0xaf8] sm:$0xff]
        %v894 = vld [vmem:[#allocation5 + $0xb00] sm:$0xff]
        %v895 = vld [vmem:[#allocation5 + $0xb08] sm:$0xff]
        %v896 = vld [vmem:[#allocation5 + $0xb10] sm:$0xff]
        %v897 = vld [vmem:[#allocation5 + $0xb18] sm:$0xff]
        %v898 = vld [vmem:[#allocation5 + $0xb20] sm:$0xff]
        %v899 = vld [vmem:[#allocation5 + $0xb28] sm:$0xff]
        %v900 = vld [vmem:[#allocation5 + $0xb30] sm:$0xff]
        %v901 = vld [vmem:[#allocation5 + $0xb38] sm:$0xff]
        %v902 = vld [vmem:[#allocation5 + $0xb40] sm:$0xff]
        %v903 = vld [vmem:[#allocation5 + $0xb48] sm:$0xff]
        %v904 = vld [vmem:[#allocation5 + $0xb50] sm:$0xff]
        %v905 = vld [vmem:[#allocation5 + $0xb58] sm:$0xff]
        %v906 = vld [vmem:[#allocation5 + $0xb60] sm:$0xff]
        %v907 = vld [vmem:[#allocation5 + $0xb68] sm:$0xff]
        %v908 = vld [vmem:[#allocation5 + $0xb70] sm:$0xff]
        %v909 = vld [vmem:[#allocation5 + $0xb78] sm:$0xff]
        %v910 = vld [vmem:[#allocation5 + $0xb80] sm:$0xff]
        %v911 = vld [vmem:[#allocation5 + $0xb88] sm:$0xff]
        %v912 = vld [vmem:[#allocation5 + $0xb90] sm:$0xff]
        %v913 = vld [vmem:[#allocation5 + $0xb98] sm:$0xff]
        %v914 = vld [vmem:[#allocation5 + $0xba0] sm:$0xff]
        %v915 = vld [vmem:[#allocation5 + $0xba8] sm:$0xff]
        %v916 = vld [vmem:[#allocation5 + $0xbb0] sm:$0xff]
        %v917 = vld [vmem:[#allocation5 + $0xbb8] sm:$0xff]
        %v918 = vld [vmem:[#allocation5 + $0xbc0] sm:$0xff]
        %v919 = vld [vmem:[#allocation5 + $0xbc8] sm:$0xff]
        %v920 = vld [vmem:[#allocation5 + $0xbd0] sm:$0xff]
        %v921 = vld [vmem:[#allocation5 + $0xbd8] sm:$0xff]
        %v922 = vld [vmem:[#allocation5 + $0xbe0] sm:$0xff]
        %v923 = vld [vmem:[#allocation5 + $0xbe8] sm:$0xff]
        %v924 = vld [vmem:[#allocation5 + $0xbf0] sm:$0xff]
        %v925 = vld [vmem:[#allocation5 + $0xbf8] sm:$0xff]
        %v926 = vld [vmem:[#allocation7] sm:$0x1]
        %927 = vmatpush.msra.mxu0 %v557
        %928 = vmatpush.msra.mxu0 %v556
        %929 = vmatpush.msra.mxu0 %v555
        %930 = vmatpush.msra.mxu0 %v554
        %931 = vmatpush.msra.mxu0 %v553
        %932 = vmatpush.msra.mxu0 %v552
        %933 = vmatpush.msra.mxu0 %v551
        %934 = vmatpush.msra.mxu0 %v550
        %935 = vmatpush.msra.mxu0 %v549
        %936 = vmatpush.msra.mxu0 %v548
        %937 = vmatpush.msra.mxu0 %v547
        %938 = vmatpush.msra.mxu0 %v546
        %939 = vmatpush.msra.mxu0 %v545
        %940 = vmatpush.msra.mxu0 %v544
        %941 = vmatpush.msra.mxu0 %v543
        %942 = vmatpush.msra.mxu0 %v542
        %943 = vmatmul.f32.gmra.mxu0 %v443
        %v944 = vpop.f32.mrf.mxu0
        %v945 = vadd.f32 %v926, %v944
        %946 = vdwg.mxu0
        %947 = vmatpush.msra.mxu0 %v573
        %948 = vmatpush.msra.mxu0 %v572
        %949 = vmatpush.msra.mxu0 %v571
        %950 = vmatpush.msra.mxu0 %v570
        %951 = vmatpush.msra.mxu0 %v569
        %952 = vmatpush.msra.mxu0 %v568
        %953 = vmatpush.msra.mxu0 %v567
        %954 = vmatpush.msra.mxu0 %v566
        %955 = vmatpush.msra.mxu0 %v565
        %956 = vmatpush.msra.mxu0 %v564
        %957 = vmatpush.msra.mxu0 %v563
        %958 = vmatpush.msra.mxu0 %v562
        %959 = vmatpush.msra.mxu0 %v561
        %960 = vmatpush.msra.mxu0 %v560
        %961 = vmatpush.msra.mxu0 %v559
        %962 = vmatpush.msra.mxu0 %v558
        %963 = vmatmul.f32.gmra.mxu0 %v481
        %v964 = vpop.f32.mrf.mxu0
        %v965 = vadd.f32 %v945, %v964
        %966 = vdwg.mxu0
        %967 = vmatpush.msra.mxu0 %v589
        %968 = vmatpush.msra.mxu0 %v588
        %969 = vmatpush.msra.mxu0 %v587
        %970 = vmatpush.msra.mxu0 %v586
        %971 = vmatpush.msra.mxu0 %v585
        %972 = vmatpush.msra.mxu0 %v584
        %973 = vmatpush.msra.mxu0 %v583
        %974 = vmatpush.msra.mxu0 %v582
        %975 = vmatpush.msra.mxu0 %v581
        %976 = vmatpush.msra.mxu0 %v580
        %977 = vmatpush.msra.mxu0 %v579
        %978 = vmatpush.msra.mxu0 %v578
        %979 = vmatpush.msra.mxu0 %v577
        %980 = vmatpush.msra.mxu0 %v576
        %981 = vmatpush.msra.mxu0 %v575
        %982 = vmatpush.msra.mxu0 %v574
        %983 = vmatmul.f32.gmra.mxu0 %v519
        %v984 = vpop.f32.mrf.mxu0
        %v985 = vadd.f32 %v965, %v984
        %986 = vdwg.mxu0
        %987 = vmatpush.msra.mxu0 %v605
        %988 = vmatpush.msra.mxu0 %v604
        %989 = vmatpush.msra.mxu0 %v603
        %990 = vmatpush.msra.mxu0 %v602
        %991 = vmatpush.msra.mxu0 %v601
        %992 = vmatpush.msra.mxu0 %v600
        %993 = vmatpush.msra.mxu0 %v599
        %994 = vmatpush.msra.mxu0 %v598
        %995 = vmatpush.msra.mxu0 %v597
        %996 = vmatpush.msra.mxu0 %v596
        %997 = vmatpush.msra.mxu0 %v595
        %998 = vmatpush.msra.mxu0 %v594
        %999 = vmatpush.msra.mxu0 %v593
        %1000 = vmatpush.msra.mxu0 %v592
        %1001 = vmatpush.msra.mxu0 %v591
        %1002 = vmatpush.msra.mxu0 %v590
        %1003 = vmatmul.f32.gmra.mxu0 %v459
        %v1004 = vpop.f32.mrf.mxu0
        %v1005 = vadd.f32 %v985, %v1004
        %1006 = vdwg.mxu0
        %1007 = vmatpush.msra.mxu0 %v621
        %1008 = vmatpush.msra.mxu0 %v620
        %1009 = vmatpush.msra.mxu0 %v619
        %1010 = vmatpush.msra.mxu0 %v618
        %1011 = vmatpush.msra.mxu0 %v617
        %1012 = vmatpush.msra.mxu0 %v616
        %1013 = vmatpush.msra.mxu0 %v615
        %1014 = vmatpush.msra.mxu0 %v614
        %1015 = vmatpush.msra.mxu0 %v613
        %1016 = vmatpush.msra.mxu0 %v612
        %1017 = vmatpush.msra.mxu0 %v611
        %1018 = vmatpush.msra.mxu0 %v610
        %1019 = vmatpush.msra.mxu0 %v609
        %1020 = vmatpush.msra.mxu0 %v608
        %1021 = vmatpush.msra.mxu0 %v607
        %1022 = vmatpush.msra.mxu0 %v606
        %1023 = vmatmul.f32.gmra.mxu0 %v497
        %v1024 = vpop.f32.mrf.mxu0
        %v1025 = vadd.f32 %v1005, %v1024
        %1026 = vdwg.mxu0
        %1027 = vmatpush.msra.mxu0 %v637
        %1028 = vmatpush.msra.mxu0 %v636
        %1029 = vmatpush.msra.mxu0 %v635
        %1030 = vmatpush.msra.mxu0 %v634
        %1031 = vmatpush.msra.mxu0 %v633
        %1032 = vmatpush.msra.mxu0 %v632
        %1033 = vmatpush.msra.mxu0 %v631
        %1034 = vmatpush.msra.mxu0 %v630
        %1035 = vmatpush.msra.mxu0 %v629
        %1036 = vmatpush.msra.mxu0 %v628
        %1037 = vmatpush.msra.mxu0 %v627
        %1038 = vmatpush.msra.mxu0 %v626
        %1039 = vmatpush.msra.mxu0 %v625
        %1040 = vmatpush.msra.mxu0 %v624
        %1041 = vmatpush.msra.mxu0 %v623
        %1042 = vmatpush.msra.mxu0 %v622
        %1043 = vmatmul.f32.gmra.mxu0 %v535
        %v1044 = vpop.f32.mrf.mxu0
        %v1045 = vadd.f32 %v1025, %v1044
        %1046 = vdwg.mxu0
        %1047 = vmatpush.msra.mxu0 %v653
        %1048 = vmatpush.msra.mxu0 %v652
        %1049 = vmatpush.msra.mxu0 %v651
        %1050 = vmatpush.msra.mxu0 %v650
        %1051 = vmatpush.msra.mxu0 %v649
        %1052 = vmatpush.msra.mxu0 %v648
        %1053 = vmatpush.msra.mxu0 %v647
        %1054 = vmatpush.msra.mxu0 %v646
        %1055 = vmatpush.msra.mxu0 %v645
        %1056 = vmatpush.msra.mxu0 %v644
        %1057 = vmatpush.msra.mxu0 %v643
        %1058 = vmatpush.msra.mxu0 %v642
        %1059 = vmatpush.msra.mxu0 %v641
        %1060 = vmatpush.msra.mxu0 %v640
        %1061 = vmatpush.msra.mxu0 %v639
        %1062 = vmatpush.msra.mxu0 %v638
        %1063 = vmatmul.f32.gmra.mxu0 %v447
        %v1064 = vpop.f32.mrf.mxu0
        %v1065 = vadd.f32 %v1045, %v1064
        %1066 = vdwg.mxu0
        %1067 = vmatpush.msra.mxu0 %v669
        %1068 = vmatpush.msra.mxu0 %v668
        %1069 = vmatpush.msra.mxu0 %v667
        %1070 = vmatpush.msra.mxu0 %v666
        %1071 = vmatpush.msra.mxu0 %v665
        %1072 = vmatpush.msra.mxu0 %v664
        %1073 = vmatpush.msra.mxu0 %v663
        %1074 = vmatpush.msra.mxu0 %v662
        %1075 = vmatpush.msra.mxu0 %v661
        %1076 = vmatpush.msra.mxu0 %v660
        %1077 = vmatpush.msra.mxu0 %v659
        %1078 = vmatpush.msra.mxu0 %v658
        %1079 = vmatpush.msra.mxu0 %v657
        %1080 = vmatpush.msra.mxu0 %v656
        %1081 = vmatpush.msra.mxu0 %v655
        %1082 = vmatpush.msra.mxu0 %v654
        %1083 = vmatmul.f32.gmra.mxu0 %v485
        %v1084 = vpop.f32.mrf.mxu0
        %v1085 = vadd.f32 %v1065, %v1084
        %1086 = vdwg.mxu0
        %1087 = vmatpush.msra.mxu0 %v685
        %1088 = vmatpush.msra.mxu0 %v684
        %1089 = vmatpush.msra.mxu0 %v683
        %1090 = vmatpush.msra.mxu0 %v682
        %1091 = vmatpush.msra.mxu0 %v681
        %1092 = vmatpush.msra.mxu0 %v680
        %1093 = vmatpush.msra.mxu0 %v679
        %1094 = vmatpush.msra.mxu0 %v678
        %1095 = vmatpush.msra.mxu0 %v677
        %1096 = vmatpush.msra.mxu0 %v676
        %1097 = vmatpush.msra.mxu0 %v675
        %1098 = vmatpush.msra.mxu0 %v674
        %1099 = vmatpush.msra.mxu0 %v673
        %1100 = vmatpush.msra.mxu0 %v672
        %1101 = vmatpush.msra.mxu0 %v671
        %1102 = vmatpush.msra.mxu0 %v670
        %1103 = vmatmul.f32.gmra.mxu0 %v523
        %v1104 = vpop.f32.mrf.mxu0
        %v1105 = vadd.f32 %v1085, %v1104
        %1106 = vdwg.mxu0
        %1107 = vmatpush.msra.mxu0 %v701
        %1108 = vmatpush.msra.mxu0 %v700
        %1109 = vmatpush.msra.mxu0 %v699
        %1110 = vmatpush.msra.mxu0 %v698
        %1111 = vmatpush.msra.mxu0 %v697
        %1112 = vmatpush.msra.mxu0 %v696
        %1113 = vmatpush.msra.mxu0 %v695
        %1114 = vmatpush.msra.mxu0 %v694
        %1115 = vmatpush.msra.mxu0 %v693
        %1116 = vmatpush.msra.mxu0 %v692
        %1117 = vmatpush.msra.mxu0 %v691
        %1118 = vmatpush.msra.mxu0 %v690
        %1119 = vmatpush.msra.mxu0 %v689
        %1120 = vmatpush.msra.mxu0 %v688
        %1121 = vmatpush.msra.mxu0 %v687
        %1122 = vmatpush.msra.mxu0 %v686
        %1123 = vmatmul.f32.gmra.mxu0 %v461
        %v1124 = vpop.f32.mrf.mxu0
        %v1125 = vadd.f32 %v1105, %v1124
        %1126 = vdwg.mxu0
        %1127 = vmatpush.msra.mxu0 %v717
        %1128 = vmatpush.msra.mxu0 %v716
        %1129 = vmatpush.msra.mxu0 %v715
        %1130 = vmatpush.msra.mxu0 %v714
        %1131 = vmatpush.msra.mxu0 %v713
        %1132 = vmatpush.msra.mxu0 %v712
        %1133 = vmatpush.msra.mxu0 %v711
        %1134 = vmatpush.msra.mxu0 %v710
        %1135 = vmatpush.msra.mxu0 %v709
        %1136 = vmatpush.msra.mxu0 %v708
        %1137 = vmatpush.msra.mxu0 %v707
        %1138 = vmatpush.msra.mxu0 %v706
        %1139 = vmatpush.msra.mxu0 %v705
        %1140 = vmatpush.msra.mxu0 %v704
        %1141 = vmatpush.msra.mxu0 %v703
        %1142 = vmatpush.msra.mxu0 %v702
        %1143 = vmatmul.f32.gmra.mxu0 %v499
        %v1144 = vpop.f32.mrf.mxu0
        %v1145 = vadd.f32 %v1125, %v1144
        %1146 = vdwg.mxu0
        %1147 = vmatpush.msra.mxu0 %v733
        %1148 = vmatpush.msra.mxu0 %v732
        %1149 = vmatpush.msra.mxu0 %v731
        %1150 = vmatpush.msra.mxu0 %v730
        %1151 = vmatpush.msra.mxu0 %v729
        %1152 = vmatpush.msra.mxu0 %v728
        %1153 = vmatpush.msra.mxu0 %v727
        %1154 = vmatpush.msra.mxu0 %v726
        %1155 = vmatpush.msra.mxu0 %v725
        %1156 = vmatpush.msra.mxu0 %v724
        %1157 = vmatpush.msra.mxu0 %v723
        %1158 = vmatpush.msra.mxu0 %v722
        %1159 = vmatpush.msra.mxu0 %v721
        %1160 = vmatpush.msra.mxu0 %v720
        %1161 = vmatpush.msra.mxu0 %v719
        %1162 = vmatpush.msra.mxu0 %v718
        %1163 = vmatmul.f32.gmra.mxu0 %v537
        %v1164 = vpop.f32.mrf.mxu0
        %v1165 = vadd.f32 %v1145, %v1164
        %1166 = vdwg.mxu0
        %1167 = vmatpush.msra.mxu0 %v749
        %1168 = vmatpush.msra.mxu0 %v748
        %1169 = vmatpush.msra.mxu0 %v747
        %1170 = vmatpush.msra.mxu0 %v746
        %1171 = vmatpush.msra.mxu0 %v745
        %1172 = vmatpush.msra.mxu0 %v744
        %1173 = vmatpush.msra.mxu0 %v743
        %1174 = vmatpush.msra.mxu0 %v742
        %1175 = vmatpush.msra.mxu0 %v741
        %1176 = vmatpush.msra.mxu0 %v740
        %1177 = vmatpush.msra.mxu0 %v739
        %1178 = vmatpush.msra.mxu0 %v738
        %1179 = vmatpush.msra.mxu0 %v737
        %1180 = vmatpush.msra.mxu0 %v736
        %1181 = vmatpush.msra.mxu0 %v735
        %1182 = vmatpush.msra.mxu0 %v734
        %1183 = vmatmul.f32.gmra.mxu0 %v453
        %v1184 = vpop.f32.mrf.mxu0
        %v1185 = vadd.f32 %v1165, %v1184
        %1186 = vdwg.mxu0
        %1187 = vmatpush.msra.mxu0 %v765
        %1188 = vmatpush.msra.mxu0 %v764
        %1189 = vmatpush.msra.mxu0 %v763
        %1190 = vmatpush.msra.mxu0 %v762
        %1191 = vmatpush.msra.mxu0 %v761
        %1192 = vmatpush.msra.mxu0 %v760
        %1193 = vmatpush.msra.mxu0 %v759
        %1194 = vmatpush.msra.mxu0 %v758
        %1195 = vmatpush.msra.mxu0 %v757
        %1196 = vmatpush.msra.mxu0 %v756
        %1197 = vmatpush.msra.mxu0 %v755
        %1198 = vmatpush.msra.mxu0 %v754
        %1199 = vmatpush.msra.mxu0 %v753
        %1200 = vmatpush.msra.mxu0 %v752
        %1201 = vmatpush.msra.mxu0 %v751
        %1202 = vmatpush.msra.mxu0 %v750
        %1203 = vmatmul.f32.gmra.mxu0 %v491
        %v1204 = vpop.f32.mrf.mxu0
        %v1205 = vadd.f32 %v1185, %v1204
        %1206 = vdwg.mxu0
        %1207 = vmatpush.msra.mxu0 %v781
        %1208 = vmatpush.msra.mxu0 %v780
        %1209 = vmatpush.msra.mxu0 %v779
        %1210 = vmatpush.msra.mxu0 %v778
        %1211 = vmatpush.msra.mxu0 %v777
        %1212 = vmatpush.msra.mxu0 %v776
        %1213 = vmatpush.msra.mxu0 %v775
        %1214 = vmatpush.msra.mxu0 %v774
        %1215 = vmatpush.msra.mxu0 %v773
        %1216 = vmatpush.msra.mxu0 %v772
        %1217 = vmatpush.msra.mxu0 %v771
        %1218 = vmatpush.msra.mxu0 %v770
        %1219 = vmatpush.msra.mxu0 %v769
        %1220 = vmatpush.msra.mxu0 %v768
        %1221 = vmatpush.msra.mxu0 %v767
        %1222 = vmatpush.msra.mxu0 %v766
        %1223 = vmatmul.f32.gmra.mxu0 %v529
        %v1224 = vpop.f32.mrf.mxu0
        %v1225 = vadd.f32 %v1205, %v1224
        %1226 = vdwg.mxu0
        %1227 = vmatpush.msra.mxu0 %v797
        %1228 = vmatpush.msra.mxu0 %v796
        %1229 = vmatpush.msra.mxu0 %v795
        %1230 = vmatpush.msra.mxu0 %v794
        %1231 = vmatpush.msra.mxu0 %v793
        %1232 = vmatpush.msra.mxu0 %v792
        %1233 = vmatpush.msra.mxu0 %v791
        %1234 = vmatpush.msra.mxu0 %v790
        %1235 = vmatpush.msra.mxu0 %v789
        %1236 = vmatpush.msra.mxu0 %v788
        %1237 = vmatpush.msra.mxu0 %v787
        %1238 = vmatpush.msra.mxu0 %v786
        %1239 = vmatpush.msra.mxu0 %v785
        %1240 = vmatpush.msra.mxu0 %v784
        %1241 = vmatpush.msra.mxu0 %v783
        %1242 = vmatpush.msra.mxu0 %v782
        %1243 = vmatmul.f32.gmra.mxu0 %v463
        %v1244 = vpop.f32.mrf.mxu0
        %v1245 = vadd.f32 %v1225, %v1244
        %1246 = vdwg.mxu0
        %1247 = vmatpush.msra.mxu0 %v813
        %1248 = vmatpush.msra.mxu0 %v812
        %1249 = vmatpush.msra.mxu0 %v811
        %1250 = vmatpush.msra.mxu0 %v810
        %1251 = vmatpush.msra.mxu0 %v809
        %1252 = vmatpush.msra.mxu0 %v808
        %1253 = vmatpush.msra.mxu0 %v807
        %1254 = vmatpush.msra.mxu0 %v806
        %1255 = vmatpush.msra.mxu0 %v805
        %1256 = vmatpush.msra.mxu0 %v804
        %1257 = vmatpush.msra.mxu0 %v803
        %1258 = vmatpush.msra.mxu0 %v802
        %1259 = vmatpush.msra.mxu0 %v801
        %1260 = vmatpush.msra.mxu0 %v800
        %1261 = vmatpush.msra.mxu0 %v799
        %1262 = vmatpush.msra.mxu0 %v798
        %1263 = vmatmul.f32.gmra.mxu0 %v501
        %v1264 = vpop.f32.mrf.mxu0
        %v1265 = vadd.f32 %v1245, %v1264
        %1266 = vdwg.mxu0
        %1267 = vmatpush.msra.mxu0 %v829
        %1268 = vmatpush.msra.mxu0 %v828
        %1269 = vmatpush.msra.mxu0 %v827
        %1270 = vmatpush.msra.mxu0 %v826
        %1271 = vmatpush.msra.mxu0 %v825
        %1272 = vmatpush.msra.mxu0 %v824
        %1273 = vmatpush.msra.mxu0 %v823
        %1274 = vmatpush.msra.mxu0 %v822
        %1275 = vmatpush.msra.mxu0 %v821
        %1276 = vmatpush.msra.mxu0 %v820
        %1277 = vmatpush.msra.mxu0 %v819
        %1278 = vmatpush.msra.mxu0 %v818
        %1279 = vmatpush.msra.mxu0 %v817
        %1280 = vmatpush.msra.mxu0 %v816
        %1281 = vmatpush.msra.mxu0 %v815
        %1282 = vmatpush.msra.mxu0 %v814
        %1283 = vmatmul.f32.gmra.mxu0 %v539
        %v1284 = vpop.f32.mrf.mxu0
        %v1285 = vadd.f32 %v1265, %v1284
        %1286 = vdwg.mxu0
        %1287 = vmatpush.msra.mxu0 %v845
        %1288 = vmatpush.msra.mxu0 %v844
        %1289 = vmatpush.msra.mxu0 %v843
        %1290 = vmatpush.msra.mxu0 %v842
        %1291 = vmatpush.msra.mxu0 %v841
        %1292 = vmatpush.msra.mxu0 %v840
        %1293 = vmatpush.msra.mxu0 %v839
        %1294 = vmatpush.msra.mxu0 %v838
        %1295 = vmatpush.msra.mxu0 %v837
        %1296 = vmatpush.msra.mxu0 %v836
        %1297 = vmatpush.msra.mxu0 %v835
        %1298 = vmatpush.msra.mxu0 %v834
        %1299 = vmatpush.msra.mxu0 %v833
        %1300 = vmatpush.msra.mxu0 %v832
        %1301 = vmatpush.msra.mxu0 %v831
        %1302 = vmatpush.msra.mxu0 %v830
        %1303 = vmatmul.f32.gmra.mxu0 %v457
        %v1304 = vpop.f32.mrf.mxu0
        %v1305 = vadd.f32 %v1285, %v1304
        %1306 = vdwg.mxu0
        %1307 = vmatpush.msra.mxu0 %v861
        %1308 = vmatpush.msra.mxu0 %v860
        %1309 = vmatpush.msra.mxu0 %v859
        %1310 = vmatpush.msra.mxu0 %v858
        %1311 = vmatpush.msra.mxu0 %v857
        %1312 = vmatpush.msra.mxu0 %v856
        %1313 = vmatpush.msra.mxu0 %v855
        %1314 = vmatpush.msra.mxu0 %v854
        %1315 = vmatpush.msra.mxu0 %v853
        %1316 = vmatpush.msra.mxu0 %v852
        %1317 = vmatpush.msra.mxu0 %v851
        %1318 = vmatpush.msra.mxu0 %v850
        %1319 = vmatpush.msra.mxu0 %v849
        %1320 = vmatpush.msra.mxu0 %v848
        %1321 = vmatpush.msra.mxu0 %v847
        %1322 = vmatpush.msra.mxu0 %v846
        %1323 = vmatmul.f32.gmra.mxu0 %v495
        %v1324 = vpop.f32.mrf.mxu0
        %v1325 = vadd.f32 %v1305, %v1324
        %1326 = vdwg.mxu0
        %1327 = vmatpush.msra.mxu0 %v877
        %1328 = vmatpush.msra.mxu0 %v876
        %1329 = vmatpush.msra.mxu0 %v875
        %1330 = vmatpush.msra.mxu0 %v874
        %1331 = vmatpush.msra.mxu0 %v873
        %1332 = vmatpush.msra.mxu0 %v872
        %1333 = vmatpush.msra.mxu0 %v871
        %1334 = vmatpush.msra.mxu0 %v870
        %1335 = vmatpush.msra.mxu0 %v869
        %1336 = vmatpush.msra.mxu0 %v868
        %1337 = vmatpush.msra.mxu0 %v867
        %1338 = vmatpush.msra.mxu0 %v866
        %1339 = vmatpush.msra.mxu0 %v865
        %1340 = vmatpush.msra.mxu0 %v864
        %1341 = vmatpush.msra.mxu0 %v863
        %1342 = vmatpush.msra.mxu0 %v862
        %1343 = vmatmul.f32.gmra.mxu0 %v533
        %v1344 = vpop.f32.mrf.mxu0
        %v1345 = vadd.f32 %v1325, %v1344
        %1346 = vdwg.mxu0
        %1347 = vmatpush.msra.mxu0 %v893
        %1348 = vmatpush.msra.mxu0 %v892
        %1349 = vmatpush.msra.mxu0 %v891
        %1350 = vmatpush.msra.mxu0 %v890
        %1351 = vmatpush.msra.mxu0 %v889
        %1352 = vmatpush.msra.mxu0 %v888
        %1353 = vmatpush.msra.mxu0 %v887
        %1354 = vmatpush.msra.mxu0 %v886
        %1355 = vmatpush.msra.mxu0 %v885
        %1356 = vmatpush.msra.mxu0 %v884
        %1357 = vmatpush.msra.mxu0 %v883
        %1358 = vmatpush.msra.mxu0 %v882
        %1359 = vmatpush.msra.mxu0 %v881
        %1360 = vmatpush.msra.mxu0 %v880
        %1361 = vmatpush.msra.mxu0 %v879
        %1362 = vmatpush.msra.mxu0 %v878
        %1363 = vmatmul.f32.gmra.mxu0 %v465
        %v1364 = vpop.f32.mrf.mxu0
        %v1365 = vadd.f32 %v1345, %v1364
        %1366 = vdwg.mxu0
        %1367 = vmatpush.msra.mxu0 %v909
        %1368 = vmatpush.msra.mxu0 %v908
        %1369 = vmatpush.msra.mxu0 %v907
        %1370 = vmatpush.msra.mxu0 %v906
        %1371 = vmatpush.msra.mxu0 %v905
        %1372 = vmatpush.msra.mxu0 %v904
        %1373 = vmatpush.msra.mxu0 %v903
        %1374 = vmatpush.msra.mxu0 %v902
        %1375 = vmatpush.msra.mxu0 %v901
        %1376 = vmatpush.msra.mxu0 %v900
        %1377 = vmatpush.msra.mxu0 %v899
        %1378 = vmatpush.msra.mxu0 %v898
        %1379 = vmatpush.msra.mxu0 %v897
        %1380 = vmatpush.msra.mxu0 %v896
        %1381 = vmatpush.msra.mxu0 %v895
        %1382 = vmatpush.msra.mxu0 %v894
        %1383 = vmatmul.f32.gmra.mxu0 %v503
        %v1384 = vpop.f32.mrf.mxu0
        %v1385 = vadd.f32 %v1365, %v1384
        %1386 = vdwg.mxu0
        %1387 = vmatpush.msra.mxu0 %v925
        %1388 = vmatpush.msra.mxu0 %v924
        %1389 = vmatpush.msra.mxu0 %v923
        %1390 = vmatpush.msra.mxu0 %v922
        %1391 = vmatpush.msra.mxu0 %v921
        %1392 = vmatpush.msra.mxu0 %v920
        %1393 = vmatpush.msra.mxu0 %v919
        %1394 = vmatpush.msra.mxu0 %v918
        %1395 = vmatpush.msra.mxu0 %v917
        %1396 = vmatpush.msra.mxu0 %v916
        %1397 = vmatpush.msra.mxu0 %v915
        %1398 = vmatpush.msra.mxu0 %v914
        %1399 = vmatpush.msra.mxu0 %v913
        %1400 = vmatpush.msra.mxu0 %v912
        %1401 = vmatpush.msra.mxu0 %v911
        %1402 = vmatpush.msra.mxu0 %v910
        %1403 = vmatmul.f32.gmra.mxu0 %v541
        %v1404 = vpop.f32.mrf.mxu0
        %v1405 = vadd.f32 %v1385, %v1404
        %1406 = vdwg.mxu0
        %1407 = vst [vmem:[%s262] sm:$0x1] %v1405
        %s1408 = sand.u32 %s139, 1
        %s1409 = scalar_lea.sflag [#allocation4], %s1408
        %s1410 = sand.u32 %s139, 1
        %s1411 = scalar_lea.vmem [#allocation8], %s1410
        // Predicated region
        $region53: #{backbone_forward.1} parent=39 // pred_check
          %p1412 = pneg %p149
        $region54: #{backbone_forward.1} parent=39 // pred_check_branch
          %1414 = sbr.rel (%p1412) target = $region56
        $region55: #{backbone_forward.1} parent=39 // pred_region
          %1416 = vsyncadd %s1409, 0
          %s1417 = scalar_lea.hbm %s5, %s21
          %s1419 = sshll.u32 %s1411, 4
          %s1420 = int_to_ptr.vmem [resolvable:$true] %s1419
          %s1421 = sshll.u32 %s1417, 4
          %s1422 = int_to_ptr.hbm [resolvable:$true] %s1421
          %1424 = dma.vmem_to_hbm [thread:$0]  %s1420, 16, %s1422, %s1409
        $region56: #{backbone_forward.1} parent=39 // pred_fallthru
          _
      $region40: #{backbone_forward.1} parent=5 // pred_fallthru
        _
      %p1425 = scmp.le.s32.totalorder 2, %s16
      // Predicated region
      $region57: #{backbone_forward.1} parent=5 // pred_check
        %p1426 = pneg %p1425
      $region58: #{backbone_forward.1} parent=5 // pred_check_branch
        %1428 = sbr.rel (%p1426) target = $region60
      $region59: #{backbone_forward.1} parent=5 // pred_region
        %s1429 = ssub.s32 %s16, 2
        // Predicated region
        $region61: #{backbone_forward.1} parent=59 // pred_check
          %p1430 = pneg %p155
        $region62: #{backbone_forward.1} parent=59 // pred_check_branch
          %1432 = sbr.rel (%p1430) target = $region64
        $region63: #{backbone_forward.1} parent=59 // pred_region
          %s1433 = sand.u32 %s140, 1
          %s1434 = scalar_lea.sflag [#allocation4], %s1433
          %s1435 = sand.u32 %s140, 1
          %s1436 = scalar_lea.vmem [#allocation8], %s1435
          %1438 = dma.done %s1434, 16
        $region64: #{backbone_forward.1} parent=59 // pred_fallthru
          _
      $region60: #{backbone_forward.1} parent=5 // pred_fallthru
        _
    $region6: #{backbone_forward.1} parent=1 // loop_footer
      %s20 = sadd.s32 1, %s16
    $region7: #{backbone_forward.1} parent=1 // loop_footer_branch
      %15 = sbr.rel target = $region3
    $region8: #{backbone_forward.1} parent=1 // loop_exit
      _
    %1439 = vsyncpa [#allocation3], 1
    %s1440 = scalar_lea.sflag [#allocation3], 1
    %1441 = vsyncpa %s1440, 1
    %1442 = vsyncpa [#allocation6], 1
    %1443 = vsyncpa [#allocation4], 1
    %s1444 = scalar_lea.sflag [#allocation4], 1
    %1445 = vsyncpa %s1444, 1

</llo_original>
